<compile_context>
chip_gen: v7x
topology: tpu7x:2x2x1
jax: 0.10.0
libtpu: 0.0.40
codegen_flags: <defaults>
</compile_context>

<pallas_src>
import functools
import math

import jax
import jax.numpy as jnp
from jax.experimental import pallas as pl
from jax.experimental.pallas import tpu as pltpu

BN_EPS = 1e-5
LEAKY_SLOPE = 0.1


# --------------------------------------------------------------------------------------
# small helpers
# --------------------------------------------------------------------------------------

def _round_up(x, m):
    return (x + m - 1) // m * m


def _lcm(a, b):
    return a * b // math.gcd(a, b)


@functools.lru_cache(maxsize=None)
def _vmem_budget():
    """Generation-aware per-core VMEM budget (bytes) with headroom for compiler scratch."""
    cap = None
    try:
        cap = getattr(pltpu.get_tpu_info(), "vmem_capacity_bytes", None)
    except Exception:
        cap = None
    if not cap:
        cap = 64 * 1024 * 1024          # conservative: v7x per-TensorCore VMEM
    return int(min(int(cap) * 3 // 4, 100 * 1024 * 1024))


def _choose_tm(mp, budget):
    """Row tile for the im2col matmul; mp is already a multiple of 128."""
    cands = (1024, 512, 256, 128) if budget >= 80 * 1024 * 1024 else (512, 256, 128)
    for d in cands:
        if mp % d == 0:
            return d
    return mp


def _choose_tk(k, max_tk=2048):
    """Reduction tile: never pad K. Full K when small, else a 128-multiple divisor."""
    if k <= max_tk:
        return k
    for d in range(max_tk, 127, -128):
        if k % d == 0:
            return d
    return k


def _choose_th(hout, wout, cin, cout, budget):
    """Output-row tile (in image lines) for the implicit-GEMM conv, or None to fall back.

    Requires Wout % 16 == 0 so the per-tap (th, Wout, Cin) -> (th*Wout, Cin) bf16 reshape
    is tile-exact and the bf16 y block rows are 16-aligned."""
    if hout <= 0 or wout < 16 or wout % 16 != 0:
        return None
    max_rows = min(2048, max(16, (budget // 2) // max(1, 4 * cin + 8 * cout)))
    best = None
    for th in range(1, hout + 1):
        if hout % th:
            continue
        rows = th * wout
        if rows <= max_rows and rows % 16 == 0:
            best = th
    return best


def _ew_rows(r, row_bytes, align, target):
    """Row block (and padded row count) for bandwidth-bound elementwise kernels."""
    if r * row_bytes <= target:
        return r, r
    cap = max(align, min(r, target // max(row_bytes, 1)))
    for tr in (4096, 2048, 1024, 512, 256, 128, 64, 32, 16, 8):
        if tr % align == 0 and tr <= cap and r % tr == 0:
            return tr, r
    tr = max(align, min(1024, (cap // align) * align))
    return tr, _round_up(r, tr)


# --------------------------------------------------------------------------------------
# Pallas kernels
# --------------------------------------------------------------------------------------

def _implicit_conv_kernel(x_hbm, w_ref, b_ref, y_ref, sum_ref, ssq_ref, slab, sem,
                          *, kh, kw, th, wout, hpt, hp_lines, cin):
    """Implicit-GEMM conv tile: DMA one padded input slab, accumulate kh*kw MXU taps,
    add bias, store bf16 y, emit per-tile pre-bias column sum / sum-of-squares."""
    i = pl.program_id(0)
    b = i // hpt
    h0 = (i % hpt) * th
    base = b * hp_lines + h0
    sh = th + kh - 1

    cp = pltpu.make_async_copy(x_hbm.at[pl.ds(base, sh)], slab, sem.at[0])
    cp.start()
    cp.wait()
    # TODO(synk): the slab DMA is not double-buffered across grid steps; exposed latency
    #             is negligible next to per-step compute / fixed overhead at these sizes.

    rows = th * wout
    cout = w_ref.shape[1]
    acc = jnp.zeros((rows, cout), jnp.float32)
    for t in range(kh * kw):
        ih, iw = divmod(t, kw)
        tap = slab[pl.ds(ih, th), pl.ds(iw, wout), :].reshape(rows, cin)
        acc = acc + jnp.dot(tap, w_ref[pl.ds(t * cin, cin), :],
                            preferred_element_type=jnp.float32)

    y_ref[...] = (acc + b_ref[...]).astype(y_ref.dtype)
    s = jnp.sum(acc, axis=0, keepdims=True)
    q = jnp.sum(acc * acc, axis=0, keepdims=True)
    sum_ref[...] = jnp.broadcast_to(s, sum_ref.shape)
    ssq_ref[...] = jnp.broadcast_to(q, ssq_ref.shape)


def _mm_epilogue(z, b_ref, y_ref, sum_ref, ssq_ref, m_real, tm):
    y_ref[...] = (z + b_ref[...]).astype(y_ref.dtype)
    if m_real % tm != 0:   # static: padded rows exist -> mask them out of the stats
        i = pl.program_id(0)
        row = jax.lax.broadcasted_iota(jnp.int32, z.shape, 0) + i * tm
        z = jnp.where(row < m_real, z, 0.0)
    s = jnp.sum(z, axis=0, keepdims=True)
    q = jnp.sum(z * z, axis=0, keepdims=True)
    sum_ref[...] = jnp.broadcast_to(s, sum_ref.shape)
    ssq_ref[...] = jnp.broadcast_to(q, ssq_ref.shape)


def _mm_bias_stats_kernel(a_ref, w_ref, b_ref, y_ref, sum_ref, ssq_ref, *acc,
                          m_real, tm, n_k):
    """Fallback / 1x1 path: y = a @ w + bias (bf16 out) + pre-bias column stats."""
    if n_k == 1:
        z = jnp.dot(a_ref[...], w_ref[...], preferred_element_type=jnp.float32)
        _mm_epilogue(z, b_ref, y_ref, sum_ref, ssq_ref, m_real, tm)
    else:
        acc_ref = acc[0]

        @pl.when(pl.program_id(1) == 0)
        def _():
            acc_ref[...] = jnp.zeros_like(acc_ref)

        acc_ref[...] += jnp.dot(a_ref[...], w_ref[...],
                                preferred_element_type=jnp.float32)

        @pl.when(pl.program_id(1) == pl.num_programs(1) - 1)
        def _():
            _mm_epilogue(acc_ref[...], b_ref, y_ref, sum_ref, ssq_ref, m_real, tm)


def _affine_lrelu_kernel(y_ref, sc_ref, sh_ref, o_ref):
    z = y_ref[...].astype(jnp.float32) * sc_ref[...] + sh_ref[...]
    o_ref[...] = jnp.where(z >= 0, z, LEAKY_SLOPE * z).astype(o_ref.dtype)


def _affine_lrelu_pool_kernel(top_ref, bot_ref, sc_ref, sh_ref, o_ref, *, cout):
    """Fused BN-affine + LeakyReLU + MaxPool2d(2,2).  Inputs are row-pair blocks of the
    conv output laid out as (rows, 1, W/2, 2*Cout); the two w-parities live in the lane
    halves of the last dim."""
    sc = sc_ref[...]
    sh = sh_ref[...]

    def act(v):
        z = v.astype(jnp.float32) * sc + sh
        return jnp.where(z >= 0, z, LEAKY_SLOPE * z)

    t = act(top_ref[...][:, 0])          # (tr, W/2, 2*cout)
    b = act(bot_ref[...][:, 0])
    m1 = jnp.maximum(t, b)
    o_ref[...] = jnp.maximum(m1[:, :, :cout], m1[:, :, cout:]).astype(o_ref.dtype)


# --------------------------------------------------------------------------------------
# Pallas wrappers
# --------------------------------------------------------------------------------------

def _conv_implicit(xb, wb, bias, *, kh, kw, pad, th, hout, wout, budget):
    """Implicit-GEMM conv.  xb: (B,H,W,Cin) bf16, wb: (kh*kw*Cin, Cout) bf16.
    Returns y:(m,Cout) bf16, pre-bias col_sum/col_ssq:(Cout,), m."""
    B, H, W, Cin = xb.shape
    K, Cout = wb.shape
    if pad:
        xb = jnp.pad(xb, ((0, 0), (pad, pad), (pad, pad), (0, 0)))
    Hp, Wp = H + 2 * pad, W + 2 * pad
    x3 = xb.reshape(B * Hp, Wp, Cin)

    rows = th * wout
    hpt = hout // th
    n_tiles = B * hpt
    m = B * hout * wout
    sh = th + kh - 1
    bias2 = bias.reshape(1, Cout).astype(jnp.float32)

    est = (sh * Wp * Cin * 2 + 2 * rows * Cout * 2 + rows * Cout * 4
           + rows * Cin * 2 + 2 * K * Cout * 2 + 4 * 8 * Cout * 4 + 2 * Cout * 4)
    vmem_limit = int(min(max(2 * est, 8 * 1024 * 1024), budget))

    kernel = functools.partial(_implicit_conv_kernel, kh=kh, kw=kw, th=th, wout=wout,
                               hpt=hpt, hp_lines=Hp, cin=Cin)

    y, s_part, q_part = pl.pallas_call(
        kernel,
        out_shape=(jax.ShapeDtypeStruct((m, Cout), jnp.bfloat16),
                   jax.ShapeDtypeStruct((n_tiles * 8, Cout), jnp.float32),
                   jax.ShapeDtypeStruct((n_tiles * 8, Cout), jnp.float32)),
        grid_spec=pltpu.PrefetchScalarGridSpec(
            num_scalar_prefetch=0,
            grid=(n_tiles,),
            in_specs=[
                pl.BlockSpec(memory_space=pl.ANY),              # padded input, manual DMA
                pl.BlockSpec((K, Cout), lambda i: (0, 0)),      # full weights, resident
                pl.BlockSpec((1, Cout), lambda i: (0, 0)),      # bias
            ],
            out_specs=(
                pl.BlockSpec((rows, Cout), lambda i: (i, 0)),
                pl.BlockSpec((8, Cout), lambda i: (i, 0)),
                pl.BlockSpec((8, Cout), lambda i: (i, 0)),
            ),
            scratch_shapes=[pltpu.VMEM((sh, Wp, Cin), jnp.bfloat16),
                            pltpu.SemaphoreType.DMA((1,))]),
        compiler_params=pltpu.CompilerParams(
            dimension_semantics=("parallel",),
            vmem_limit_bytes=vmem_limit),
    )(x3, wb, bias2)

    col_sum = jnp.sum(s_part, axis=0) / 8.0
    col_ssq = jnp.sum(q_part, axis=0) / 8.0
    return y, col_sum, col_ssq, m


def _matmul_bias_stats(a, w, bias, m_real, budget):
    """a:(Mp,K) bf16 @ w:(K,N) bf16 + bias -> y:(Mp,N) bf16, pre-bias column stats."""
    mp, k = a.shape
    _, n = w.shape
    tm = _choose_tm(mp, budget)
    tk = _choose_tk(k)
    n_m = mp // tm
    n_k = k // tk
    bias2 = bias.reshape(1, n).astype(jnp.float32)

    est = (2 * tm * tk * 2 + 2 * tk * n * 2 + 2 * tm * n * 2
           + (tm * n * 4 if n_k > 1 else 0) + 4 * 8 * n * 4 + 2 * n * 4)
    vmem_limit = int(min(max(2 * est, 8 * 1024 * 1024), budget))

    kernel = functools.partial(_mm_bias_stats_kernel, m_real=m_real, tm=tm, n_k=n_k)
    scratch = [pltpu.VMEM((tm, n), jnp.float32)] if n_k > 1 else []

    y, s_part, q_part = pl.pallas_call(
        kernel,
        out_shape=(jax.ShapeDtypeStruct((mp, n), jnp.bfloat16),
                   jax.ShapeDtypeStruct((n_m * 8, n), jnp.float32),
                   jax.ShapeDtypeStruct((n_m * 8, n), jnp.float32)),
        grid_spec=pltpu.PrefetchScalarGridSpec(
            num_scalar_prefetch=0,
            grid=(n_m, n_k),
            in_specs=[
                pl.BlockSpec((tm, tk), lambda i, kk: (i, kk)),
                pl.BlockSpec((tk, n), lambda i, kk: (kk, 0)),
                pl.BlockSpec((1, n), lambda i, kk: (0, 0)),
            ],
            out_specs=(
                pl.BlockSpec((tm, n), lambda i, kk: (i, 0)),
                pl.BlockSpec((8, n), lambda i, kk: (i, 0)),
                pl.BlockSpec((8, n), lambda i, kk: (i, 0)),
            ),
            scratch_shapes=scratch),
        compiler_params=pltpu.CompilerParams(
            dimension_semantics=("parallel", "arbitrary"),
            vmem_limit_bytes=vmem_limit),
    )(a, w, bias2)

    col_sum = jnp.sum(s_part, axis=0) / 8.0
    col_ssq = jnp.sum(q_part, axis=0) / 8.0
    return y, col_sum, col_ssq


def _conv_im2col(xb, wb, bias, *, kh, kw, stride, pad, hout, wout, budget):
    """Fallback conv path (and 1x1 convs, which have zero im2col expansion)."""
    B, H, W, Cin = xb.shape
    K, Cout = wb.shape
    if pad:
        xb = jnp.pad(xb, ((0, 0), (pad, pad), (pad, pad), (0, 0)))
    cols = []
    for ih in range(kh):
        for iw in range(kw):
            cols.append(xb[:, ih:ih + (hout - 1) * stride + 1:stride,
                           iw:iw + (wout - 1) * stride + 1:stride, :])
    patches = jnp.concatenate(cols, axis=-1) if len(cols) > 1 else cols[0]

    m = B * hout * wout
    mp = _round_up(m, 128)
    a = patches.reshape(m, K)
    if mp != m:
        a = jnp.pad(a, ((0, mp - m), (0, 0)))
    y, cs, cq = _matmul_bias_stats(a, wb, bias, m_real=m, budget=budget)
    return y, cs, cq, m


def _affine_lrelu_2d(y2, sc2, sh2, out_dtype, budget):
    R, L = y2.shape
    in_b = y2.dtype.itemsize
    out_b = jnp.dtype(out_dtype).itemsize
    align = 16 if (in_b == 2 or out_b == 2) else 8
    row_bytes = L * (in_b + out_b)
    tr, rp = _ew_rows(R, row_bytes, align, target=4 * 1024 * 1024)
    if rp != R:
        y2 = jnp.pad(y2, ((0, rp - R), (0, 0)))
    vmem_limit = int(min(max(4 * tr * row_bytes + (1 << 20), 8 * 1024 * 1024), budget))

    out = pl.pallas_call(
        _affine_lrelu_kernel,
        out_shape=jax.ShapeDtypeStruct((rp, L), out_dtype),
        grid_spec=pltpu.PrefetchScalarGridSpec(
            num_scalar_prefetch=0,
            grid=(rp // tr,),
            in_specs=[
                pl.BlockSpec((tr, L), lambda i: (i, 0)),
                pl.BlockSpec((1, L), lambda i: (0, 0)),
                pl.BlockSpec((1, L), lambda i: (0, 0)),
            ],
            out_specs=pl.BlockSpec((tr, L), lambda i: (i, 0))),
        compiler_params=pltpu.CompilerParams(
            dimension_semantics=("parallel",),
            vmem_limit_bytes=vmem_limit),
    )(y2, sc2, sh2)
    return out[:R] if rp != R else out


def _affine_lrelu(y, scale, shift, out_dtype, budget):
    """Per-channel affine + LeakyReLU over y:(M, Cout), lane-dense when Cout < 128."""
    m, c = y.shape
    sc = scale.astype(jnp.float32)
    sh = shift.astype(jnp.float32)
    if c < 128:
        L = _lcm(c, 128)
        if (m * c) % L == 0:
            reps = L // c
            y2 = y.reshape((m * c) // L, L)
            sc2 = jnp.tile(sc, reps).reshape(1, L)
            sh2 = jnp.tile(sh, reps).reshape(1, L)
            out = _affine_lrelu_2d(y2, sc2, sh2, out_dtype, budget)
            return out.reshape(m, c)
    return _affine_lrelu_2d(y, sc.reshape(1, c), sh.reshape(1, c), out_dtype, budget)


def _affine_lrelu_pool(y5, scale, shift, cout, out_dtype, budget):
    """y5: (G, 2, W/2, 2*Cout) view of the conv output; fused affine+LeakyReLU+2x2 max."""
    G, _, W2, twoc = y5.shape
    sc2 = jnp.tile(scale.astype(jnp.float32), 2).reshape(1, twoc)
    sh2 = jnp.tile(shift.astype(jnp.float32), 2).reshape(1, twoc)
    in_b = y5.dtype.itemsize
    out_b = jnp.dtype(out_dtype).itemsize
    row_bytes = 2 * W2 * twoc * in_b + W2 * cout * out_b

    cap = max(1, min(G, (4 * 1024 * 1024) // max(row_bytes, 1)))
    tr = 1
    for d in range(cap, 0, -1):
        if G % d == 0:
            tr = d
            break
    vmem_limit = int(min(max(4 * tr * row_bytes + (1 << 20), 8 * 1024 * 1024), budget))

    kernel = functools.partial(_affine_lrelu_pool_kernel, cout=cout)
    return pl.pallas_call(
        kernel,
        out_shape=jax.ShapeDtypeStruct((G, W2, cout), out_dtype),
        grid_spec=pltpu.PrefetchScalarGridSpec(
            num_scalar_prefetch=0,
            grid=(G // tr,),
            in_specs=[
                pl.BlockSpec((tr, 1, W2, twoc), lambda i: (i, 0, 0, 0)),  # even rows
                pl.BlockSpec((tr, 1, W2, twoc), lambda i: (i, 1, 0, 0)),  # odd rows
                pl.BlockSpec((1, twoc), lambda i: (0, 0)),
                pl.BlockSpec((1, twoc), lambda i: (0, 0)),
            ],
            out_specs=pl.BlockSpec((tr, W2, cout), lambda i: (i, 0, 0))),
        compiler_params=pltpu.CompilerParams(
            dimension_semantics=("parallel",),
            vmem_limit_bytes=vmem_limit),
    )(y5, y5, sc2, sh2)


# --------------------------------------------------------------------------------------
# conv_layer: Conv2d(+bias) -> BatchNorm2d (train-mode batch stats) -> LeakyReLU(0.1),
#             optionally fused with a trailing MaxPool2d(2, 2).
# --------------------------------------------------------------------------------------

@functools.partial(jax.jit, static_argnames=("stride", "padding", "pool_after", "final"))
def conv_bn_lrelu(x, w, b, gamma, beta, *, stride, padding, pool_after=False, final=False):
    B, H, W, Cin = x.shape
    kh, kw, _, Cout = w.shape
    hout = (H + 2 * padding - kh) // stride + 1
    wout = (W + 2 * padding - kw) // stride + 1
    budget = _vmem_budget()

    xb = x.astype(jnp.bfloat16)
    wb = w.reshape(kh * kw * Cin, Cout).astype(jnp.bfloat16)

    th = _choose_th(hout, wout, Cin, Cout, budget) if (stride == 1 and kh * kw > 1) else None
    if th is not None:
        y, cs, cq, m = _conv_implicit(xb, wb, b, kh=kh, kw=kw, pad=padding, th=th,
                                      hout=hout, wout=wout, budget=budget)
    else:
        y, cs, cq, m = _conv_im2col(xb, wb, b, kh=kh, kw=kw, stride=stride, pad=padding,
                                    hout=hout, wout=wout, budget=budget)

    # train-mode BatchNorm2d from pre-bias f32 statistics (biased variance, eps=1e-5)
    mean_z = cs / m
    var = jnp.maximum(cq / m - mean_z * mean_z, 0.0)
    mean = mean_z + b
    scale = gamma * jax.lax.rsqrt(var + BN_EPS)
    shift = beta - mean * scale

    out_dtype = jnp.float32 if final else jnp.bfloat16

    if not pool_after:
        out = _affine_lrelu(y, scale, shift, out_dtype, budget)[:m]
        return out.reshape(B, hout, wout, Cout)

    # fused BN-affine + LeakyReLU + MaxPool2d(2, 2)
    hp, wp = (hout // 2) * 2, (wout // 2) * 2
    yv = y[:m].reshape(B, hout, wout, Cout)
    if (hp, wp) != (hout, wout):
        yv = yv[:, :hp, :wp, :]
    y5 = yv.reshape(B * (hp // 2), 2, wp // 2, 2 * Cout)     # pure (free) reshape
    out = _affine_lrelu_pool(y5, scale, shift, Cout, out_dtype, budget)
    return out.reshape(B, hp // 2, wp // 2, Cout)


# --------------------------------------------------------------------------------------
# conv_pool_block
# --------------------------------------------------------------------------------------

def conv_pool_block_config(kernel_sizes, in_maps, out_maps, n_repeat):
    """Mirror of the PyTorch conv_pool_block __init__: list of (cin, cout, kernel)."""
    assert len(kernel_sizes) == len(out_maps), "Inconsistent kernel and filter lengths"
    cfg = []
    for _ in range(n_repeat):
        cfg.append((in_maps, out_maps[0], kernel_sizes[0]))
        for i in range(1, len(out_maps)):
            cfg.append((out_maps[i - 1], out_maps[i], kernel_sizes[i]))
    return cfg


def conv_pool_block_forward(x_nchw, params, cfg, pooling):
    """x_nchw: (B, Cin, H, W) f32 -> (B, Cout, H', W') f32 (NCHW, like torch)."""
    x = jnp.transpose(x_nchw, (0, 2, 3, 1))  # NCHW -> NHWC
    n_layers = len(cfg)
    for li, ((cin, cout, ksz), p) in enumerate(zip(cfg, params)):
        w, b, g, be = p
        last = li == n_layers - 1
        x = conv_bn_lrelu(x, w, b, g, be, stride=1, padding=ksz // 2,
                          pool_after=bool(pooling) and last, final=last)
    return jnp.transpose(x, (0, 3, 1, 2))    # back to NCHW


def init_params(key, cfg):
    params = []
    for (cin, cout, ksz) in cfg:
        key, k1, k2, k3, k4 = jax.random.split(key, 5)
        fan_in = cin * ksz * ksz
        w = jax.random.normal(k1, (ksz, ksz, cin, cout), jnp.float32) * (2.0 / fan_in) ** 0.5
        b = 0.01 * jax.random.normal(k2, (cout,), jnp.float32)
        g = 1.0 + 0.1 * jax.random.normal(k3, (cout,), jnp.float32)
        be = 0.1 * jax.random.normal(k4, (cout,), jnp.float32)
        params.append((w, b, g, be))
    return params


if __name__ == "__main__":
    root = jax.random.PRNGKey(0)
    pkey, xkey = jax.random.split(root)

    # Small conv_pool_block: kernel_sizes=[1, 3], in_maps=16, out_maps=[8, 16],
    # n_repeat=2 (valid since in_maps == out_maps[-1]), pooling=True.
    kernel_sizes = [1, 3]
    in_maps = 16
    out_maps = [8, 16]
    n_repeat = 2
    pooling = True

    cfg = conv_pool_block_config(kernel_sizes, in_maps, out_maps, n_repeat)
    params = init_params(pkey, cfg)

    x = jax.random.normal(xkey, (2, in_maps, 16, 16), jnp.float32)  # NCHW, like torch
    out = conv_pool_block_forward(x, params, cfg, pooling)
    out = jax.block_until_ready(out)

    assert out.shape == (2, out_maps[-1], 8, 8), out.shape
    assert out.dtype == jnp.float32
    assert bool(jnp.all(jnp.isfinite(out)))
    print("KERNEL_OK")
</pallas_src>

<mosaic_0001>
module attributes {stable_mosaic.version = 11 : i64} {
  func.func @_mm_bias_stats_kernel(%arg0: i32, %arg1: i32, %arg2: memref<512x16xbf16, #tpu.memory_space<vmem>>, %arg3: memref<16x8xbf16, #tpu.memory_space<vmem>>, %arg4: memref<1x8xf32, #tpu.memory_space<vmem>>, %arg5: memref<512x8xbf16, #tpu.memory_space<vmem>>, %arg6: memref<8x8xf32, #tpu.memory_space<vmem>>, %arg7: memref<8x8xf32, #tpu.memory_space<vmem>>) attributes {dimension_semantics = [#tpu.dimension_semantics<parallel>, #tpu.dimension_semantics<arbitrary>], iteration_bounds = array<i64: 1, 1>, scalar_prefetch = 0 : i64, scratch_operands = 0 : i64, tpu.core_type = #tpu.core_type<tc>, window_params = [{transform_indices = @transform_0, window_bounds = array<i64: 512, 16>}, {transform_indices = @transform_1, window_bounds = array<i64: 16, 8>}, {pipeline_mode = #tpu.pipeline_mode<synchronous>, transform_indices = @transform_2, window_bounds = array<i64: 1, 8>}, {transform_indices = @transform_3, window_bounds = array<i64: 512, 8>}, {transform_indices = @transform_4, window_bounds = array<i64: 8, 8>}, {transform_indices = @transform_5, window_bounds = array<i64: 8, 8>}]} {
    %c0 = arith.constant 0 : index
    %c0_0 = arith.constant 0 : index
    %0 = vector.load %arg2[%c0, %c0_0] : memref<512x16xbf16, #tpu.memory_space<vmem>>, vector<512x16xbf16>
    %c0_1 = arith.constant 0 : index
    %c0_2 = arith.constant 0 : index
    %1 = vector.load %arg3[%c0_1, %c0_2] : memref<16x8xbf16, #tpu.memory_space<vmem>>, vector<16x8xbf16>
    %cst = arith.constant dense<0.000000e+00> : vector<512x8xf32>
    %2 = tpu.matmul %0, %1, %cst {dimension_numbers = #tpu.dot_dimension_numbers<[1], [0], [0], [1], [0, 0, 1, 1], [], []>} : vector<512x16xbf16>, vector<16x8xbf16>, vector<512x8xf32> -> vector<512x8xf32>
    %c0_3 = arith.constant 0 : index
    %c0_4 = arith.constant 0 : index
    %3 = vector.load %arg4[%c0_3, %c0_4] : memref<1x8xf32, #tpu.memory_space<vmem>>, vector<1x8xf32>
    %4 = vector.broadcast %3 : vector<1x8xf32> to vector<512x8xf32>
    %5 = arith.addf %2, %4 : vector<512x8xf32>
    %6 = arith.truncf %5 : vector<512x8xf32> to vector<512x8xbf16>
    %c0_5 = arith.constant 0 : index
    %c0_6 = arith.constant 0 : index
    %7 = vector.load %arg5[%c0_5, %c0_6] : memref<512x8xbf16, #tpu.memory_space<vmem>>, vector<512x8xbf16>
    tpu.vector_store %arg5[%c0_5, %c0_6], %6 {strides = array<i32>} : memref<512x8xbf16, #tpu.memory_space<vmem>>, vector<512x8xbf16>,
    %cst_7 = arith.constant dense<0.000000e+00> : vector<8xf32>
    %8 = vector.multi_reduction <add>, %2, %cst_7 [0] : vector<512x8xf32> to vector<8xf32>
    %9 = vector.shape_cast %8 : vector<8xf32> to vector<1x8xf32>
    %10 = arith.mulf %2, %2 : vector<512x8xf32>
    %cst_8 = arith.constant dense<0.000000e+00> : vector<8xf32>
    %11 = vector.multi_reduction <add>, %10, %cst_8 [0] : vector<512x8xf32> to vector<8xf32>
    %12 = vector.shape_cast %11 : vector<8xf32> to vector<1x8xf32>
    %13 = vector.shape_cast %9 : vector<1x8xf32> to vector<1x8xf32>
    %14 = vector.broadcast %13 : vector<1x8xf32> to vector<8x8xf32>
    %c0_9 = arith.constant 0 : index
    %c0_10 = arith.constant 0 : index
    %15 = vector.load %arg6[%c0_9, %c0_10] : memref<8x8xf32, #tpu.memory_space<vmem>>, vector<8x8xf32>
    tpu.vector_store %arg6[%c0_9, %c0_10], %14 {strides = array<i32>} : memref<8x8xf32, #tpu.memory_space<vmem>>, vector<8x8xf32>,
    %16 = vector.shape_cast %12 : vector<1x8xf32> to vector<1x8xf32>
    %17 = vector.broadcast %16 : vector<1x8xf32> to vector<8x8xf32>
    %c0_11 = arith.constant 0 : index
    %c0_12 = arith.constant 0 : index
    %18 = vector.load %arg7[%c0_11, %c0_12] : memref<8x8xf32, #tpu.memory_space<vmem>>, vector<8x8xf32>
    tpu.vector_store %arg7[%c0_11, %c0_12], %17 {strides = array<i32>} : memref<8x8xf32, #tpu.memory_space<vmem>>, vector<8x8xf32>,
    return
  }
  func.func @transform_0(%arg0: i32, %arg1: i32) -> (i32, i32) {
    %c0_i32 = arith.constant 0 : i32
    return %arg0, %arg1 : i32, i32
  }
  func.func @transform_1(%arg0: i32, %arg1: i32) -> (i32, i32) {
    %c0_i32 = arith.constant 0 : i32
    %c0_i32_0 = arith.constant 0 : i32
    return %arg1, %c0_i32 : i32, i32
  }
  func.func @transform_2(%arg0: i32, %arg1: i32) -> (i32, i32) {
    %c0_i32 = arith.constant 0 : i32
    %c0_i32_0 = arith.constant 0 : i32
    %c0_i32_1 = arith.constant 0 : i32
    return %c0_i32, %c0_i32_0 : i32, i32
  }
  func.func @transform_3(%arg0: i32, %arg1: i32) -> (i32, i32) {
    %c0_i32 = arith.constant 0 : i32
    %c0_i32_0 = arith.constant 0 : i32
    return %arg0, %c0_i32 : i32, i32
  }
  func.func @transform_4(%arg0: i32, %arg1: i32) -> (i32, i32) {
    %c0_i32 = arith.constant 0 : i32
    %c0_i32_0 = arith.constant 0 : i32
    return %arg0, %c0_i32 : i32, i32
  }
  func.func @transform_5(%arg0: i32, %arg1: i32) -> (i32, i32) {
    %c0_i32 = arith.constant 0 : i32
    %c0_i32_0 = arith.constant 0 : i32
    return %arg0, %c0_i32 : i32, i32
  }
}

module attributes {stable_mosaic.version = 11 : i64} {
  func.func @_affine_lrelu_kernel(%arg0: i32, %arg1: memref<32x128xbf16, #tpu.memory_space<vmem>>, %arg2: memref<1x128xf32, #tpu.memory_space<vmem>>, %arg3: memref<1x128xf32, #tpu.memory_space<vmem>>, %arg4: memref<32x128xbf16, #tpu.memory_space<vmem>>) attributes {dimension_semantics = [#tpu.dimension_semantics<parallel>], iteration_bounds = array<i64: 1>, scalar_prefetch = 0 : i64, scratch_operands = 0 : i64, tpu.core_type = #tpu.core_type<tc>, window_params = [{transform_indices = @transform_0, window_bounds = array<i64: 32, 128>}, {pipeline_mode = #tpu.pipeline_mode<synchronous>, transform_indices = @transform_1, window_bounds = array<i64: 1, 128>}, {pipeline_mode = #tpu.pipeline_mode<synchronous>, transform_indices = @transform_2, window_bounds = array<i64: 1, 128>}, {transform_indices = @transform_3, window_bounds = array<i64: 32, 128>}]} {
    %c0 = arith.constant 0 : index
    %c0_0 = arith.constant 0 : index
    %0 = vector.load %arg1[%c0, %c0_0] : memref<32x128xbf16, #tpu.memory_space<vmem>>, vector<32x128xbf16>
    %1 = arith.extf %0 : vector<32x128xbf16> to vector<32x128xf32>
    %c0_1 = arith.constant 0 : index
    %c0_2 = arith.constant 0 : index
    %2 = vector.load %arg2[%c0_1, %c0_2] : memref<1x128xf32, #tpu.memory_space<vmem>>, vector<1x128xf32>
    %3 = vector.broadcast %2 : vector<1x128xf32> to vector<32x128xf32>
    %4 = arith.mulf %1, %3 : vector<32x128xf32>
    %c0_3 = arith.constant 0 : index
    %c0_4 = arith.constant 0 : index
    %5 = vector.load %arg3[%c0_3, %c0_4] : memref<1x128xf32, #tpu.memory_space<vmem>>, vector<1x128xf32>
    %6 = vector.broadcast %5 : vector<1x128xf32> to vector<32x128xf32>
    %7 = arith.addf %4, %6 : vector<32x128xf32>
    %cst = arith.constant 0.000000e+00 : f32
    %8 = vector.broadcast %cst : f32 to vector<32x128xf32>
    %9 = arith.cmpf oge, %7, %8 : vector<32x128xf32>
    %cst_5 = arith.constant 1.000000e-01 : f32
    %10 = vector.broadcast %cst_5 : f32 to vector<32x128xf32>
    %11 = arith.mulf %10, %7 : vector<32x128xf32>
    %12 = arith.select %9, %7, %11 : vector<32x128xi1>, vector<32x128xf32>
    %13 = arith.truncf %12 : vector<32x128xf32> to vector<32x128xbf16>
    %c0_6 = arith.constant 0 : index
    %c0_7 = arith.constant 0 : index
    %14 = vector.load %arg4[%c0_6, %c0_7] : memref<32x128xbf16, #tpu.memory_space<vmem>>, vector<32x128xbf16>
    tpu.vector_store %arg4[%c0_6, %c0_7], %13 {strides = array<i32>} : memref<32x128xbf16, #tpu.memory_space<vmem>>, vector<32x128xbf16>,
    return
  }
  func.func @transform_0(%arg0: i32) -> (i32, i32) {
    %c0_i32 = arith.constant 0 : i32
    %c0_i32_0 = arith.constant 0 : i32
    return %arg0, %c0_i32 : i32, i32
  }
  func.func @transform_1(%arg0: i32) -> (i32, i32) {
    %c0_i32 = arith.constant 0 : i32
    %c0_i32_0 = arith.constant 0 : i32
    %c0_i32_1 = arith.constant 0 : i32
    return %c0_i32, %c0_i32_0 : i32, i32
  }
  func.func @transform_2(%arg0: i32) -> (i32, i32) {
    %c0_i32 = arith.constant 0 : i32
    %c0_i32_0 = arith.constant 0 : i32
    %c0_i32_1 = arith.constant 0 : i32
    return %c0_i32, %c0_i32_0 : i32, i32
  }
  func.func @transform_3(%arg0: i32) -> (i32, i32) {
    %c0_i32 = arith.constant 0 : i32
    %c0_i32_0 = arith.constant 0 : i32
    return %arg0, %c0_i32 : i32, i32
  }
}

</mosaic_0001>

<llo_original>
// kernel: tile.18
$region0: #{tile.18}
  #allocation0 [shape = 's32[1]{0}', space=sflag, size = 0x4, scoped, tag = 'scoped memory for tile.18']
  %s0 = inlined_call_operand.vmem [shape: f32[8], index: 0, kind: input, shape index: {}]
  %s1 = inlined_call_operand.vmem [shape: f32[16,8], index: 1, kind: output, shape index: {}]
  // Predicated region
  $region2: #{tile.18} parent=0 // pred_check
    _
  $region3: #{tile.18} parent=0 // pred_check_branch
    %3 = sbr.rel (0) target = $region5
  $region4: #{tile.18} parent=0 // pred_region
    _
  $region5: #{tile.18} parent=0 // pred_fallthru
    _
  %v4 = vld [vmem:[%s0] ss:$0 sm:$0xff]
  %5 = vst [vmem:[%s1] sm:$0xff] %v4
  %s6 = scalar_lea.vmem %s1, 8
  %7 = vst [vmem:[%s6] sm:$0xff] %v4

// kernel: tile.19
$region0: #{tile.19}
  %s0 = inlined_call_operand.vmem [shape: f32[16,8], index: 0, kind: input, shape index: {}]
  %s1 = inlined_call_operand.vmem [shape: f32[1,128], index: 1, kind: output, shape index: {}]
  $region1: #{tile.19} parent=0
    #allocation0 [shape = 'u8[4096]{0}', space=vmem, size = 0x1000, scoped, tag = 'scoped mem for output reshape']
    %v2 = vld [vmem:[%s0] sm:$0x1]
    %vm3 = vcmask 64512
    %4 = vst.msk [vmem:[#allocation0] sm:$0x1] %vm3, %v2
    %s5 = scalar_lea.vmem %s0, 15
    %v6 = vld [vmem:[%s5] sm:$0x1]
    %7 = vrot.lane.b32.xlu0 %v6, 120
    %v8 = vpop.permute.xlu0 %7
    %vm9 = vcmask 1048512
    %10 = vst.msk [vmem:[#allocation0] sm:$0x1] %vm9, %v8
    %s11 = scalar_lea.vmem %s0, 14
    %v12 = vld [vmem:[%s11] sm:$0x1]
    %13 = vrot.lane.b32.xlu0 %v12, 112
    %v14 = vpop.permute.xlu0 %13
    %vm15 = vcmask 982912
    %16 = vst.msk [vmem:[#allocation0] sm:$0x1] %vm15, %v14
    %s17 = scalar_lea.vmem %s0, 13
    %v18 = vld [vmem:[%s17] sm:$0x1]
    %19 = vrot.lane.b32.xlu0 %v18, 104
    %v20 = vpop.permute.xlu0 %19
    %vm21 = vcmask 917312
    %22 = vst.msk [vmem:[#allocation0] sm:$0x1] %vm21, %v20
    %s23 = scalar_lea.vmem %s0, 12
    %v24 = vld [vmem:[%s23] sm:$0x1]
    %25 = vrot.lane.b32.xlu0 %v24, 96
    %v26 = vpop.permute.xlu0 %25
    %vm27 = vcmask 851712
    %28 = vst.msk [vmem:[#allocation0] sm:$0x1] %vm27, %v26
    %s29 = scalar_lea.vmem %s0, 11
    %v30 = vld [vmem:[%s29] sm:$0x1]
    %31 = vrot.lane.b32.xlu0 %v30, 88
    %v32 = vpop.permute.xlu0 %31
    %vm33 = vcmask 786112
    %34 = vst.msk [vmem:[#allocation0] sm:$0x1] %vm33, %v32
    %s35 = scalar_lea.vmem %s0, 10
    %v36 = vld [vmem:[%s35] sm:$0x1]
    %37 = vrot.lane.b32.xlu0 %v36, 80
    %v38 = vpop.permute.xlu0 %37
    %vm39 = vcmask 720512
    %40 = vst.msk [vmem:[#allocation0] sm:$0x1] %vm39, %v38
    %s41 = scalar_lea.vmem %s0, 9
    %v42 = vld [vmem:[%s41] sm:$0x1]
    %43 = vrot.lane.b32.xlu0 %v42, 72
    %v44 = vpop.permute.xlu0 %43
    %vm45 = vcmask 654912
    %46 = vst.msk [vmem:[#allocation0] sm:$0x1] %vm45, %v44
    %s47 = scalar_lea.vmem %s0, 8
    %v48 = vld [vmem:[%s47] sm:$0x1]
    %49 = vrot.lane.b32.xlu0 %v48, 64
    %v50 = vpop.permute.xlu0 %49
    %vm51 = vcmask 589312
    %52 = vst.msk [vmem:[#allocation0] sm:$0x1] %vm51, %v50
    %s53 = scalar_lea.vmem %s0, 7
    %v54 = vld [vmem:[%s53] sm:$0x1]
    %55 = vrot.lane.b32.xlu0 %v54, 56
    %v56 = vpop.permute.xlu0 %55
    %vm57 = vcmask 523712
    %58 = vst.msk [vmem:[#allocation0] sm:$0x1] %vm57, %v56
    %s59 = scalar_lea.vmem %s0, 6
    %v60 = vld [vmem:[%s59] sm:$0x1]
    %61 = vrot.lane.b32.xlu0 %v60, 48
    %v62 = vpop.permute.xlu0 %61
    %vm63 = vcmask 458112
    %64 = vst.msk [vmem:[#allocation0] sm:$0x1] %vm63, %v62
    %s65 = scalar_lea.vmem %s0, 5
    %v66 = vld [vmem:[%s65] sm:$0x1]
    %67 = vrot.lane.b32.xlu0 %v66, 40
    %v68 = vpop.permute.xlu0 %67
    %vm69 = vcmask 392512
    %70 = vst.msk [vmem:[#allocation0] sm:$0x1] %vm69, %v68
    %s71 = scalar_lea.vmem %s0, 4
    %v72 = vld [vmem:[%s71] sm:$0x1]
    %73 = vrot.lane.b32.xlu0 %v72, 32
    %v74 = vpop.permute.xlu0 %73
    %vm75 = vcmask 326912
    %76 = vst.msk [vmem:[#allocation0] sm:$0x1] %vm75, %v74
    %s77 = scalar_lea.vmem %s0, 3
    %v78 = vld [vmem:[%s77] sm:$0x1]
    %79 = vrot.lane.b32.xlu0 %v78, 24
    %v80 = vpop.permute.xlu0 %79
    %vm81 = vcmask 261312
    %82 = vst.msk [vmem:[#allocation0] sm:$0x1] %vm81, %v80
    %s83 = scalar_lea.vmem %s0, 2
    %v84 = vld [vmem:[%s83] sm:$0x1]
    %85 = vrot.lane.b32.xlu0 %v84, 16
    %v86 = vpop.permute.xlu0 %85
    %vm87 = vcmask 195712
    %88 = vst.msk [vmem:[#allocation0] sm:$0x1] %vm87, %v86
    %s89 = scalar_lea.vmem %s0, 1
    %v90 = vld [vmem:[%s89] sm:$0x1]
    %91 = vrot.lane.b32.xlu0 %v90, 8
    %v92 = vpop.permute.xlu0 %91
    %vm93 = vcmask 130112
    %94 = vst.msk [vmem:[#allocation0] sm:$0x1] %vm93, %v92
    %s96 = sshllo.u32 0, 1
    %v98 = vld [vmem:[#allocation0] sm:%s96]
    %s99 = sshllo.u32 0, 1
    %100 = vst [vmem:[%s1] sm:%s99] %v98

// kernel: conv_bn_lrelu.3
$region0: #{conv_bn_lrelu.3}
  #allocation0 [shape = 'u32[]', space=smem, size = 0x4, offset = 0x4, fixed_abs, tag = 'smem constant byte address 0x4 - core index']
  #allocation1 [shape = 'u32[144,128]{1,0:T(1,128)}', space=vmem, size = 0x12000, scoped, tag = 'internal scratch']
  %s0 = inlined_call_operand.vmem [shape: bf16[32,128], index: 0, kind: input, shape index: {}]
  %s1 = inlined_call_operand.vmem [shape: f32[1,128], index: 1, kind: input, shape index: {}]
  %s2 = inlined_call_operand.vmem [shape: f32[1,128], index: 2, kind: input, shape index: {}]
  %s3 = inlined_call_operand.vmem [shape: bf16[32,128], index: 3, kind: output, shape index: {}]
  %s4 = sld [smem:[#allocation0]]
  $region22: #{conv_bn_lrelu.3} parent=0
    _
  %s6 = ssub.s32 1, %s4
  %s7 = scalar_select 0, %s6, %s4
  // Predicated region
  $region2: #{conv_bn_lrelu.3} parent=0 // pred_check
    _
  $region3: #{conv_bn_lrelu.3} parent=0 // pred_check_branch
    %9 = sbr.rel (0) target = $region5
  $region4: #{conv_bn_lrelu.3} parent=0 // pred_region
    _
  $region5: #{conv_bn_lrelu.3} parent=0 // pred_fallthru
    _
  // Predicated region
  $region6: #{conv_bn_lrelu.3} parent=0 // pred_check
    _
  $region7: #{conv_bn_lrelu.3} parent=0 // pred_check_branch
    %11 = sbr.rel (0) target = $region9
  $region8: #{conv_bn_lrelu.3} parent=0 // pred_region
    _
  $region9: #{conv_bn_lrelu.3} parent=0 // pred_fallthru
    _
  // Predicated region
  $region10: #{conv_bn_lrelu.3} parent=0 // pred_check
    _
  $region11: #{conv_bn_lrelu.3} parent=0 // pred_check_branch
    %13 = sbr.rel (0) target = $region13
  $region12: #{conv_bn_lrelu.3} parent=0 // pred_region
    _
  $region13: #{conv_bn_lrelu.3} parent=0 // pred_fallthru
    _
  %v14 = vld [vmem:[%s0] sm:$0xf]
  %v15 = vld [vmem:[%s0 + $0x4] sm:$0xf]
  %v16 = vld [vmem:[%s0 + $0x8] sm:$0xf]
  %v17 = vld [vmem:[%s0 + $0xc] sm:$0xf]
  %v18 = vunpack.c.l.bf16 %v14
  %v19 = vunpack.c.l.bf16 %v15
  %v20 = vunpack.c.l.bf16 %v16
  %v21 = vunpack.c.l.bf16 %v17
  %v22 = vld [vmem:[%s1] sm:$0x1]
  %v24 = vlaneseq
  %v25 = vshrl.u32 %v24, 7
  %v26 = vsub.s32 0, %v25
  %v27 = vrot.slane %v22, %v26
  %v29 = vmul.f32 %v18, %v27
  %v30 = vmul.f32 %v19, %v27
  %v31 = vmul.f32 %v20, %v27
  %v32 = vmul.f32 %v21, %v27
  %v33 = vld [vmem:[%s2] sm:$0x1]
  %v35 = vlaneseq
  %v36 = vshrl.u32 %v35, 7
  %v37 = vsub.s32 0, %v36
  %v38 = vrot.slane %v33, %v37
  %v40 = vadd.f32 %v29, %v38
  %v41 = vadd.f32 %v30, %v38
  %v42 = vadd.f32 %v31, %v38
  %v43 = vadd.f32 %v32, %v38
  %vm44 = vcmp.ge.f32.partialorder %v40, 0.0
  %vm45 = vcmp.ge.f32.partialorder %v41, 0.0
  %vm46 = vcmp.ge.f32.partialorder %v42, 0.0
  %vm47 = vcmp.ge.f32.partialorder %v43, 0.0
  %v48 = vmul.f32 %v40, 0.1
  %v49 = vmul.f32 %v41, 0.1
  %v50 = vmul.f32 %v42, 0.1
  %v51 = vmul.f32 %v43, 0.1
  %v52 = vsel %vm44, %v40, %v48
  %v53 = vsel %vm45, %v41, %v49
  %v54 = vsel %vm46, %v42, %v50
  %v55 = vsel %vm47, %v43, %v51
  %v56 = vpack.c.bf16 %v53, %v52
  %v57 = vpack.c.bf16 %v55, %v54
  %v60 = vunpack.c.l.b16 %v56
  %v61 = vunpack.c.h.b16 %v56
  %v62 = vunpack.c.l.b16 %v57
  %v63 = vunpack.c.h.b16 %v57
  %v64 = vpack.c.b16 %v60, %v60
  %v65 = vpack.c.b16 %v61, %v61
  %v66 = vpack.c.b16 %v62, %v62
  %v67 = vpack.c.b16 %v63, %v63
  %72 = vst [vmem:[%s3] sm:$0xf] %v64
  %73 = vst [vmem:[%s3 + $0x4] sm:$0xf] %v65
  %74 = vst [vmem:[%s3 + $0x8] sm:$0xf] %v66
  %75 = vst [vmem:[%s3 + $0xc] sm:$0xf] %v67
  // Predicated region
  $region14: #{conv_bn_lrelu.3} parent=0 // pred_check
    _
  $region15: #{conv_bn_lrelu.3} parent=0 // pred_check_branch
    %77 = sbr.rel (0) target = $region17
  $region16: #{conv_bn_lrelu.3} parent=0 // pred_region
    _
  $region17: #{conv_bn_lrelu.3} parent=0 // pred_fallthru
    _
  // Predicated region
  $region18: #{conv_bn_lrelu.3} parent=0 // pred_check
    _
  $region19: #{conv_bn_lrelu.3} parent=0 // pred_check_branch
    %79 = sbr.rel (0) target = $region21
  $region20: #{conv_bn_lrelu.3} parent=0 // pred_region
    _
  $region21: #{conv_bn_lrelu.3} parent=0 // pred_fallthru
    _

// kernel: conv_bn_lrelu.2
$region0: #{conv_bn_lrelu.2}
  #allocation0 [shape = 'u32[]', space=smem, size = 0x4, offset = 0x4, fixed_abs, tag = 'smem constant byte address 0x4 - core index']
  #allocation1 [shape = 'u32[144,128]{1,0:T(1,128)}', space=vmem, size = 0x12000, scoped, tag = 'internal scratch']
  %s0 = inlined_call_operand.vmem [shape: bf16[512,16], index: 0, kind: input, shape index: {}]
  %s1 = inlined_call_operand.vmem [shape: bf16[16,8], index: 1, kind: input, shape index: {}]
  %s2 = inlined_call_operand.vmem [shape: f32[1,8], index: 2, kind: input, shape index: {}]
  %s3 = inlined_call_operand.vmem [shape: bf16[512,8], index: 3, kind: output, shape index: {0}]
  %s4 = inlined_call_operand.vmem [shape: f32[8,8], index: 4, kind: output, shape index: {1}]
  %s5 = inlined_call_operand.vmem [shape: f32[8,8], index: 5, kind: output, shape index: {2}]
  %6 = xla_tuple %s3, %s4, %s5
  %s7 = sld [smem:[#allocation0]]
  $region38: #{conv_bn_lrelu.2} parent=0
    _
  %s9 = ssub.s32 1, %s7
  %s10 = scalar_select 0, %s9, %s7
  // Predicated region
  $region2: #{conv_bn_lrelu.2} parent=0 // pred_check
    _
  $region3: #{conv_bn_lrelu.2} parent=0 // pred_check_branch
    %12 = sbr.rel (0) target = $region5
  $region4: #{conv_bn_lrelu.2} parent=0 // pred_region
    _
  $region5: #{conv_bn_lrelu.2} parent=0 // pred_fallthru
    _
  // Predicated region
  $region6: #{conv_bn_lrelu.2} parent=0 // pred_check
    _
  $region7: #{conv_bn_lrelu.2} parent=0 // pred_check_branch
    %14 = sbr.rel (0) target = $region9
  $region8: #{conv_bn_lrelu.2} parent=0 // pred_region
    _
  $region9: #{conv_bn_lrelu.2} parent=0 // pred_fallthru
    _
  // Predicated region
  $region10: #{conv_bn_lrelu.2} parent=0 // pred_check
    _
  $region11: #{conv_bn_lrelu.2} parent=0 // pred_check_branch
    %16 = sbr.rel (0) target = $region13
  $region12: #{conv_bn_lrelu.2} parent=0 // pred_region
    _
  $region13: #{conv_bn_lrelu.2} parent=0 // pred_fallthru
    _
  %v18 = vld [vmem:[%s0] sm:$0xf]
  %v19 = vld [vmem:[%s0 + $0x4] sm:$0xf]
  %v20 = vld [vmem:[%s0 + $0x8] sm:$0xf]
  %v21 = vld [vmem:[%s0 + $0xc] sm:$0xf]
  %v22 = vld [vmem:[%s0 + $0x10] sm:$0xf]
  %v23 = vld [vmem:[%s0 + $0x14] sm:$0xf]
  %v24 = vld [vmem:[%s0 + $0x18] sm:$0xf]
  %v25 = vld [vmem:[%s0 + $0x1c] sm:$0xf]
  %v26 = vld [vmem:[%s0 + $0x20] sm:$0xf]
  %v27 = vld [vmem:[%s0 + $0x24] sm:$0xf]
  %v28 = vld [vmem:[%s0 + $0x28] sm:$0xf]
  %v29 = vld [vmem:[%s0 + $0x2c] sm:$0xf]
  %v30 = vld [vmem:[%s0 + $0x30] sm:$0xf]
  %v31 = vld [vmem:[%s0 + $0x34] sm:$0xf]
  %v32 = vld [vmem:[%s0 + $0x38] sm:$0xf]
  %v33 = vld [vmem:[%s0 + $0x3c] sm:$0xf]
  %v34 = vld [vmem:[%s0 + $0x40] sm:$0xf]
  %v35 = vld [vmem:[%s0 + $0x44] sm:$0xf]
  %v36 = vld [vmem:[%s0 + $0x48] sm:$0xf]
  %v37 = vld [vmem:[%s0 + $0x4c] sm:$0xf]
  %v38 = vld [vmem:[%s0 + $0x50] sm:$0xf]
  %v39 = vld [vmem:[%s0 + $0x54] sm:$0xf]
  %v40 = vld [vmem:[%s0 + $0x58] sm:$0xf]
  %v41 = vld [vmem:[%s0 + $0x5c] sm:$0xf]
  %v42 = vld [vmem:[%s0 + $0x60] sm:$0xf]
  %v43 = vld [vmem:[%s0 + $0x64] sm:$0xf]
  %v44 = vld [vmem:[%s0 + $0x68] sm:$0xf]
  %v45 = vld [vmem:[%s0 + $0x6c] sm:$0xf]
  %v46 = vld [vmem:[%s0 + $0x70] sm:$0xf]
  %v47 = vld [vmem:[%s0 + $0x74] sm:$0xf]
  %v48 = vld [vmem:[%s0 + $0x78] sm:$0xf]
  %v49 = vld [vmem:[%s0 + $0x7c] sm:$0xf]
  %v50 = vld [vmem:[%s0 + $0x80] sm:$0xf]
  %v51 = vld [vmem:[%s0 + $0x84] sm:$0xf]
  %v52 = vld [vmem:[%s0 + $0x88] sm:$0xf]
  %v53 = vld [vmem:[%s0 + $0x8c] sm:$0xf]
  %v54 = vld [vmem:[%s0 + $0x90] sm:$0xf]
  %v55 = vld [vmem:[%s0 + $0x94] sm:$0xf]
  %v56 = vld [vmem:[%s0 + $0x98] sm:$0xf]
  %v57 = vld [vmem:[%s0 + $0x9c] sm:$0xf]
  %v58 = vld [vmem:[%s0 + $0xa0] sm:$0xf]
  %v59 = vld [vmem:[%s0 + $0xa4] sm:$0xf]
  %v60 = vld [vmem:[%s0 + $0xa8] sm:$0xf]
  %v61 = vld [vmem:[%s0 + $0xac] sm:$0xf]
  %v62 = vld [vmem:[%s0 + $0xb0] sm:$0xf]
  %v63 = vld [vmem:[%s0 + $0xb4] sm:$0xf]
  %v64 = vld [vmem:[%s0 + $0xb8] sm:$0xf]
  %v65 = vld [vmem:[%s0 + $0xbc] sm:$0xf]
  %v66 = vld [vmem:[%s0 + $0xc0] sm:$0xf]
  %v67 = vld [vmem:[%s0 + $0xc4] sm:$0xf]
  %v68 = vld [vmem:[%s0 + $0xc8] sm:$0xf]
  %v69 = vld [vmem:[%s0 + $0xcc] sm:$0xf]
  %v70 = vld [vmem:[%s0 + $0xd0] sm:$0xf]
  %v71 = vld [vmem:[%s0 + $0xd4] sm:$0xf]
  %v72 = vld [vmem:[%s0 + $0xd8] sm:$0xf]
  %v73 = vld [vmem:[%s0 + $0xdc] sm:$0xf]
  %v74 = vld [vmem:[%s0 + $0xe0] sm:$0xf]
  %v75 = vld [vmem:[%s0 + $0xe4] sm:$0xf]
  %v76 = vld [vmem:[%s0 + $0xe8] sm:$0xf]
  %v77 = vld [vmem:[%s0 + $0xec] sm:$0xf]
  %v78 = vld [vmem:[%s0 + $0xf0] sm:$0xf]
  %v79 = vld [vmem:[%s0 + $0xf4] sm:$0xf]
  %v80 = vld [vmem:[%s0 + $0xf8] sm:$0xf]
  %v81 = vld [vmem:[%s0 + $0xfc] sm:$0xf]
  %v82 = vld [vmem:[%s1] sm:$0xf]
  %v83 = vld [vmem:[%s1 + $0x4] sm:$0xf]
  %v148 = vunpack.c.l.b16 %v18
  %v149 = vunpack.c.l.b16 %v19
  %v150 = vunpack.c.l.b16 %v20
  %v151 = vunpack.c.l.b16 %v21
  %v152 = vunpack.c.l.b16 %v22
  %v153 = vunpack.c.l.b16 %v23
  %v154 = vunpack.c.l.b16 %v24
  %v155 = vunpack.c.l.b16 %v25
  %v156 = vunpack.c.l.b16 %v26
  %v157 = vunpack.c.l.b16 %v27
  %v158 = vunpack.c.l.b16 %v28
  %v159 = vunpack.c.l.b16 %v29
  %v160 = vunpack.c.l.b16 %v30
  %v161 = vunpack.c.l.b16 %v31
  %v162 = vunpack.c.l.b16 %v32
  %v163 = vunpack.c.l.b16 %v33
  %v164 = vunpack.c.l.b16 %v34
  %v165 = vunpack.c.l.b16 %v35
  %v166 = vunpack.c.l.b16 %v36
  %v167 = vunpack.c.l.b16 %v37
  %v168 = vunpack.c.l.b16 %v38
  %v169 = vunpack.c.l.b16 %v39
  %v170 = vunpack.c.l.b16 %v40
  %v171 = vunpack.c.l.b16 %v41
  %v172 = vunpack.c.l.b16 %v42
  %v173 = vunpack.c.l.b16 %v43
  %v174 = vunpack.c.l.b16 %v44
  %v175 = vunpack.c.l.b16 %v45
  %v176 = vunpack.c.l.b16 %v46
  %v177 = vunpack.c.l.b16 %v47
  %v178 = vunpack.c.l.b16 %v48
  %v179 = vunpack.c.l.b16 %v49
  %v180 = vunpack.c.l.b16 %v50
  %v181 = vunpack.c.l.b16 %v51
  %v182 = vunpack.c.l.b16 %v52
  %v183 = vunpack.c.l.b16 %v53
  %v184 = vunpack.c.l.b16 %v54
  %v185 = vunpack.c.l.b16 %v55
  %v186 = vunpack.c.l.b16 %v56
  %v187 = vunpack.c.l.b16 %v57
  %v188 = vunpack.c.l.b16 %v58
  %v189 = vunpack.c.l.b16 %v59
  %v190 = vunpack.c.l.b16 %v60
  %v191 = vunpack.c.l.b16 %v61
  %v192 = vunpack.c.l.b16 %v62
  %v193 = vunpack.c.l.b16 %v63
  %v194 = vunpack.c.l.b16 %v64
  %v195 = vunpack.c.l.b16 %v65
  %v196 = vunpack.c.l.b16 %v66
  %v197 = vunpack.c.l.b16 %v67
  %v198 = vunpack.c.l.b16 %v68
  %v199 = vunpack.c.l.b16 %v69
  %v200 = vunpack.c.l.b16 %v70
  %v201 = vunpack.c.l.b16 %v71
  %v202 = vunpack.c.l.b16 %v72
  %v203 = vunpack.c.l.b16 %v73
  %v204 = vunpack.c.l.b16 %v74
  %v205 = vunpack.c.l.b16 %v75
  %v206 = vunpack.c.l.b16 %v76
  %v207 = vunpack.c.l.b16 %v77
  %v208 = vunpack.c.l.b16 %v78
  %v209 = vunpack.c.l.b16 %v79
  %v210 = vunpack.c.l.b16 %v80
  %v211 = vunpack.c.l.b16 %v81
  %v212 = vpack.c.b16 %v149, %v148
  %v213 = vpack.c.b16 %v151, %v150
  %v214 = vpack.c.b16 %v153, %v152
  %v215 = vpack.c.b16 %v155, %v154
  %v216 = vpack.c.b16 %v157, %v156
  %v217 = vpack.c.b16 %v159, %v158
  %v218 = vpack.c.b16 %v161, %v160
  %v219 = vpack.c.b16 %v163, %v162
  %v220 = vpack.c.b16 %v165, %v164
  %v221 = vpack.c.b16 %v167, %v166
  %v222 = vpack.c.b16 %v169, %v168
  %v223 = vpack.c.b16 %v171, %v170
  %v224 = vpack.c.b16 %v173, %v172
  %v225 = vpack.c.b16 %v175, %v174
  %v226 = vpack.c.b16 %v177, %v176
  %v227 = vpack.c.b16 %v179, %v178
  %v228 = vpack.c.b16 %v181, %v180
  %v229 = vpack.c.b16 %v183, %v182
  %v230 = vpack.c.b16 %v185, %v184
  %v231 = vpack.c.b16 %v187, %v186
  %v232 = vpack.c.b16 %v189, %v188
  %v233 = vpack.c.b16 %v191, %v190
  %v234 = vpack.c.b16 %v193, %v192
  %v235 = vpack.c.b16 %v195, %v194
  %v236 = vpack.c.b16 %v197, %v196
  %v237 = vpack.c.b16 %v199, %v198
  %v238 = vpack.c.b16 %v201, %v200
  %v239 = vpack.c.b16 %v203, %v202
  %v240 = vpack.c.b16 %v205, %v204
  %v241 = vpack.c.b16 %v207, %v206
  %v242 = vpack.c.b16 %v209, %v208
  %v243 = vpack.c.b16 %v211, %v210
  %v246 = vunpack.c.l.b16 %v82
  %v247 = vunpack.c.l.b16 %v83
  %v248 = vpack.c.b16 %v247, %v246
  %vm250 = vcmask 130048
  %v252 = vsel %vm250, %v212, 0
  %v255 = vsel %vm250, %v213, 0
  %v258 = vsel %vm250, %v214, 0
  %v261 = vsel %vm250, %v215, 0
  %v264 = vsel %vm250, %v216, 0
  %v267 = vsel %vm250, %v217, 0
  %v270 = vsel %vm250, %v218, 0
  %v273 = vsel %vm250, %v219, 0
  %v276 = vsel %vm250, %v220, 0
  %v279 = vsel %vm250, %v221, 0
  %v282 = vsel %vm250, %v222, 0
  %v285 = vsel %vm250, %v223, 0
  %v288 = vsel %vm250, %v224, 0
  %v291 = vsel %vm250, %v225, 0
  %v294 = vsel %vm250, %v226, 0
  %v297 = vsel %vm250, %v227, 0
  %v300 = vsel %vm250, %v228, 0
  %v303 = vsel %vm250, %v229, 0
  %v306 = vsel %vm250, %v230, 0
  %v309 = vsel %vm250, %v231, 0
  %v312 = vsel %vm250, %v232, 0
  %v315 = vsel %vm250, %v233, 0
  %v318 = vsel %vm250, %v234, 0
  %v321 = vsel %vm250, %v235, 0
  %v324 = vsel %vm250, %v236, 0
  %v327 = vsel %vm250, %v237, 0
  %v330 = vsel %vm250, %v238, 0
  %v333 = vsel %vm250, %v239, 0
  %v336 = vsel %vm250, %v240, 0
  %v339 = vsel %vm250, %v241, 0
  %v342 = vsel %vm250, %v242, 0
  %v345 = vsel %vm250, %v243, 0
  %347 = vmatprep.subr.bf16.mxu0 0
  %348 = vmatpush1.bf16.msra.mxu0 %v248
  %349 = vmatprep.subr.bf16.mxu0 0
  %350 = vmatpush1.bf16.msra.mxu0 0
  %351 = vmatprep.subr.bf16.mxu0 0
  %352 = vmatpush1.bf16.msra.mxu0 0
  %353 = vmatprep.subr.bf16.mxu0 0
  %354 = vmatpush1.bf16.msra.mxu0 0
  %355 = vmatprep.subr.bf16.mxu0 0
  %356 = vmatpush1.bf16.msra.mxu0 0
  %357 = vmatprep.subr.bf16.mxu0 0
  %358 = vmatpush1.bf16.msra.mxu0 0
  %359 = vmatprep.subr.bf16.mxu0 0
  %360 = vmatpush1.bf16.msra.mxu0 0
  %361 = vmatprep.subr.bf16.mxu0 0
  %362 = vmatpush1.bf16.msra.mxu0 0
  %363 = vmatprep.subr.bf16.mxu0 0
  %364 = vmatpush1.bf16.msra.mxu0 0
  %365 = vmatprep.subr.bf16.mxu0 0
  %366 = vmatpush1.bf16.msra.mxu0 0
  %367 = vmatprep.subr.bf16.mxu0 0
  %368 = vmatpush1.bf16.msra.mxu0 0
  %369 = vmatprep.subr.bf16.mxu0 0
  %370 = vmatpush1.bf16.msra.mxu0 0
  %371 = vmatprep.subr.bf16.mxu0 0
  %372 = vmatpush1.bf16.msra.mxu0 0
  %373 = vmatprep.subr.bf16.mxu0 0
  %374 = vmatpush1.bf16.msra.mxu0 0
  %375 = vmatprep.subr.bf16.mxu0 0
  %376 = vmatpush1.bf16.msra.mxu0 0
  %377 = vmatprep.subr.bf16.mxu0 0
  %378 = vmatpush1.bf16.msra.mxu0 0
  %379 = vmatprep.mubr.bf16.mxu0 0
  %380 = vmatmul.mubr.bf16.gmra.mrb[0].mxu0 %v252
  %v381 = vpop.f32.mrb[0].mxu0
  %v382 = vadd.f32 0.0, %v381
  %v383 = vpop.f32.mrb[0].mxu0
  %v384 = vpop.f32.mrb[0].mxu0
  %v385 = vadd.f32 0.0, %v384
  %v386 = vpop.f32.mrb[0].mxu0
  %387 = vmatprep.mubr.bf16.mxu0 0
  %388 = vmatmul.mubr.bf16.gmra.mrb[0].mxu0 %v255
  %v389 = vpop.f32.mrb[0].mxu0
  %v390 = vadd.f32 0.0, %v389
  %v391 = vpop.f32.mrb[0].mxu0
  %v392 = vpop.f32.mrb[0].mxu0
  %v393 = vadd.f32 0.0, %v392
  %v394 = vpop.f32.mrb[0].mxu0
  %395 = vmatprep.mubr.bf16.mxu0 0
  %396 = vmatmul.mubr.bf16.gmra.mrb[0].mxu0 %v258
  %v397 = vpop.f32.mrb[0].mxu0
  %v398 = vadd.f32 0.0, %v397
  %v399 = vpop.f32.mrb[0].mxu0
  %v400 = vpop.f32.mrb[0].mxu0
  %v401 = vadd.f32 0.0, %v400
  %v402 = vpop.f32.mrb[0].mxu0
  %403 = vmatprep.mubr.bf16.mxu0 0
  %404 = vmatmul.mubr.bf16.gmra.mrb[0].mxu0 %v261
  %v405 = vpop.f32.mrb[0].mxu0
  %v406 = vadd.f32 0.0, %v405
  %v407 = vpop.f32.mrb[0].mxu0
  %v408 = vpop.f32.mrb[0].mxu0
  %v409 = vadd.f32 0.0, %v408
  %v410 = vpop.f32.mrb[0].mxu0
  %411 = vmatprep.mubr.bf16.mxu0 0
  %412 = vmatmul.mubr.bf16.gmra.mrb[0].mxu0 %v264
  %v413 = vpop.f32.mrb[0].mxu0
  %v414 = vadd.f32 0.0, %v413
  %v415 = vpop.f32.mrb[0].mxu0
  %v416 = vpop.f32.mrb[0].mxu0
  %v417 = vadd.f32 0.0, %v416
  %v418 = vpop.f32.mrb[0].mxu0
  %419 = vmatprep.mubr.bf16.mxu0 0
  %420 = vmatmul.mubr.bf16.gmra.mrb[0].mxu0 %v267
  %v421 = vpop.f32.mrb[0].mxu0
  %v422 = vadd.f32 0.0, %v421
  %v423 = vpop.f32.mrb[0].mxu0
  %v424 = vpop.f32.mrb[0].mxu0
  %v425 = vadd.f32 0.0, %v424
  %v426 = vpop.f32.mrb[0].mxu0
  %427 = vmatprep.mubr.bf16.mxu0 0
  %428 = vmatmul.mubr.bf16.gmra.mrb[0].mxu0 %v270
  %v429 = vpop.f32.mrb[0].mxu0
  %v430 = vadd.f32 0.0, %v429
  %v431 = vpop.f32.mrb[0].mxu0
  %v432 = vpop.f32.mrb[0].mxu0
  %v433 = vadd.f32 0.0, %v432
  %v434 = vpop.f32.mrb[0].mxu0
  %435 = vmatprep.mubr.bf16.mxu0 0
  %436 = vmatmul.mubr.bf16.gmra.mrb[0].mxu0 %v273
  %v437 = vpop.f32.mrb[0].mxu0
  %v438 = vadd.f32 0.0, %v437
  %v439 = vpop.f32.mrb[0].mxu0
  %v440 = vpop.f32.mrb[0].mxu0
  %v441 = vadd.f32 0.0, %v440
  %v442 = vpop.f32.mrb[0].mxu0
  %443 = vmatprep.mubr.bf16.mxu0 0
  %444 = vmatmul.mubr.bf16.gmra.mrb[0].mxu0 %v276
  %v445 = vpop.f32.mrb[0].mxu0
  %v446 = vadd.f32 0.0, %v445
  %v447 = vpop.f32.mrb[0].mxu0
  %v448 = vpop.f32.mrb[0].mxu0
  %v449 = vadd.f32 0.0, %v448
  %v450 = vpop.f32.mrb[0].mxu0
  %451 = vmatprep.mubr.bf16.mxu0 0
  %452 = vmatmul.mubr.bf16.gmra.mrb[0].mxu0 %v279
  %v453 = vpop.f32.mrb[0].mxu0
  %v454 = vadd.f32 0.0, %v453
  %v455 = vpop.f32.mrb[0].mxu0
  %v456 = vpop.f32.mrb[0].mxu0
  %v457 = vadd.f32 0.0, %v456
  %v458 = vpop.f32.mrb[0].mxu0
  %459 = vmatprep.mubr.bf16.mxu0 0
  %460 = vmatmul.mubr.bf16.gmra.mrb[0].mxu0 %v282
  %v461 = vpop.f32.mrb[0].mxu0
  %v462 = vadd.f32 0.0, %v461
  %v463 = vpop.f32.mrb[0].mxu0
  %v464 = vpop.f32.mrb[0].mxu0
  %v465 = vadd.f32 0.0, %v464
  %v466 = vpop.f32.mrb[0].mxu0
  %467 = vmatprep.mubr.bf16.mxu0 0
  %468 = vmatmul.mubr.bf16.gmra.mrb[0].mxu0 %v285
  %v469 = vpop.f32.mrb[0].mxu0
  %v470 = vadd.f32 0.0, %v469
  %v471 = vpop.f32.mrb[0].mxu0
  %v472 = vpop.f32.mrb[0].mxu0
  %v473 = vadd.f32 0.0, %v472
  %v474 = vpop.f32.mrb[0].mxu0
  %475 = vmatprep.mubr.bf16.mxu0 0
  %476 = vmatmul.mubr.bf16.gmra.mrb[0].mxu0 %v288
  %v477 = vpop.f32.mrb[0].mxu0
  %v478 = vadd.f32 0.0, %v477
  %v479 = vpop.f32.mrb[0].mxu0
  %v480 = vpop.f32.mrb[0].mxu0
  %v481 = vadd.f32 0.0, %v480
  %v482 = vpop.f32.mrb[0].mxu0
  %483 = vmatprep.mubr.bf16.mxu0 0
  %484 = vmatmul.mubr.bf16.gmra.mrb[0].mxu0 %v291
  %v485 = vpop.f32.mrb[0].mxu0
  %v486 = vadd.f32 0.0, %v485
  %v487 = vpop.f32.mrb[0].mxu0
  %v488 = vpop.f32.mrb[0].mxu0
  %v489 = vadd.f32 0.0, %v488
  %v490 = vpop.f32.mrb[0].mxu0
  %491 = vmatprep.mubr.bf16.mxu0 0
  %492 = vmatmul.mubr.bf16.gmra.mrb[0].mxu0 %v294
  %v493 = vpop.f32.mrb[0].mxu0
  %v494 = vadd.f32 0.0, %v493
  %v495 = vpop.f32.mrb[0].mxu0
  %v496 = vpop.f32.mrb[0].mxu0
  %v497 = vadd.f32 0.0, %v496
  %v498 = vpop.f32.mrb[0].mxu0
  %499 = vmatprep.mubr.bf16.mxu0 0
  %500 = vmatmul.mubr.bf16.gmra.mrb[0].mxu0 %v297
  %v501 = vpop.f32.mrb[0].mxu0
  %v502 = vadd.f32 0.0, %v501
  %v503 = vpop.f32.mrb[0].mxu0
  %v504 = vpop.f32.mrb[0].mxu0
  %v505 = vadd.f32 0.0, %v504
  %v506 = vpop.f32.mrb[0].mxu0
  %507 = vmatprep.mubr.bf16.mxu0 0
  %508 = vmatmul.mubr.bf16.gmra.mrb[0].mxu0 %v300
  %v509 = vpop.f32.mrb[0].mxu0
  %v510 = vadd.f32 0.0, %v509
  %v511 = vpop.f32.mrb[0].mxu0
  %v512 = vpop.f32.mrb[0].mxu0
  %v513 = vadd.f32 0.0, %v512
  %v514 = vpop.f32.mrb[0].mxu0
  %515 = vmatprep.mubr.bf16.mxu0 0
  %516 = vmatmul.mubr.bf16.gmra.mrb[0].mxu0 %v303
  %v517 = vpop.f32.mrb[0].mxu0
  %v518 = vadd.f32 0.0, %v517
  %v519 = vpop.f32.mrb[0].mxu0
  %v520 = vpop.f32.mrb[0].mxu0
  %v521 = vadd.f32 0.0, %v520
  %v522 = vpop.f32.mrb[0].mxu0
  %523 = vmatprep.mubr.bf16.mxu0 0
  %524 = vmatmul.mubr.bf16.gmra.mrb[0].mxu0 %v306
  %v525 = vpop.f32.mrb[0].mxu0
  %v526 = vadd.f32 0.0, %v525
  %v527 = vpop.f32.mrb[0].mxu0
  %v528 = vpop.f32.mrb[0].mxu0
  %v529 = vadd.f32 0.0, %v528
  %v530 = vpop.f32.mrb[0].mxu0
  %531 = vmatprep.mubr.bf16.mxu0 0
  %532 = vmatmul.mubr.bf16.gmra.mrb[0].mxu0 %v309
  %v533 = vpop.f32.mrb[0].mxu0
  %v534 = vadd.f32 0.0, %v533
  %v535 = vpop.f32.mrb[0].mxu0
  %v536 = vpop.f32.mrb[0].mxu0
  %v537 = vadd.f32 0.0, %v536
  %v538 = vpop.f32.mrb[0].mxu0
  %539 = vmatprep.mubr.bf16.mxu0 0
  %540 = vmatmul.mubr.bf16.gmra.mrb[0].mxu0 %v312
  %v541 = vpop.f32.mrb[0].mxu0
  %v542 = vadd.f32 0.0, %v541
  %v543 = vpop.f32.mrb[0].mxu0
  %v544 = vpop.f32.mrb[0].mxu0
  %v545 = vadd.f32 0.0, %v544
  %v546 = vpop.f32.mrb[0].mxu0
  %547 = vmatprep.mubr.bf16.mxu0 0
  %548 = vmatmul.mubr.bf16.gmra.mrb[0].mxu0 %v315
  %v549 = vpop.f32.mrb[0].mxu0
  %v550 = vadd.f32 0.0, %v549
  %v551 = vpop.f32.mrb[0].mxu0
  %v552 = vpop.f32.mrb[0].mxu0
  %v553 = vadd.f32 0.0, %v552
  %v554 = vpop.f32.mrb[0].mxu0
  %555 = vmatprep.mubr.bf16.mxu0 0
  %556 = vmatmul.mubr.bf16.gmra.mrb[0].mxu0 %v318
  %v557 = vpop.f32.mrb[0].mxu0
  %v558 = vadd.f32 0.0, %v557
  %v559 = vpop.f32.mrb[0].mxu0
  %v560 = vpop.f32.mrb[0].mxu0
  %v561 = vadd.f32 0.0, %v560
  %v562 = vpop.f32.mrb[0].mxu0
  %563 = vmatprep.mubr.bf16.mxu0 0
  %564 = vmatmul.mubr.bf16.gmra.mrb[0].mxu0 %v321
  %v565 = vpop.f32.mrb[0].mxu0
  %v566 = vadd.f32 0.0, %v565
  %v567 = vpop.f32.mrb[0].mxu0
  %v568 = vpop.f32.mrb[0].mxu0
  %v569 = vadd.f32 0.0, %v568
  %v570 = vpop.f32.mrb[0].mxu0
  %571 = vmatprep.mubr.bf16.mxu0 0
  %572 = vmatmul.mubr.bf16.gmra.mrb[0].mxu0 %v324
  %v573 = vpop.f32.mrb[0].mxu0
  %v574 = vadd.f32 0.0, %v573
  %v575 = vpop.f32.mrb[0].mxu0
  %v576 = vpop.f32.mrb[0].mxu0
  %v577 = vadd.f32 0.0, %v576
  %v578 = vpop.f32.mrb[0].mxu0
  %579 = vmatprep.mubr.bf16.mxu0 0
  %580 = vmatmul.mubr.bf16.gmra.mrb[0].mxu0 %v327
  %v581 = vpop.f32.mrb[0].mxu0
  %v582 = vadd.f32 0.0, %v581
  %v583 = vpop.f32.mrb[0].mxu0
  %v584 = vpop.f32.mrb[0].mxu0
  %v585 = vadd.f32 0.0, %v584
  %v586 = vpop.f32.mrb[0].mxu0
  %587 = vmatprep.mubr.bf16.mxu0 0
  %588 = vmatmul.mubr.bf16.gmra.mrb[0].mxu0 %v330
  %v589 = vpop.f32.mrb[0].mxu0
  %v590 = vadd.f32 0.0, %v589
  %v591 = vpop.f32.mrb[0].mxu0
  %v592 = vpop.f32.mrb[0].mxu0
  %v593 = vadd.f32 0.0, %v592
  %v594 = vpop.f32.mrb[0].mxu0
  %595 = vmatprep.mubr.bf16.mxu0 0
  %596 = vmatmul.mubr.bf16.gmra.mrb[0].mxu0 %v333
  %v597 = vpop.f32.mrb[0].mxu0
  %v598 = vadd.f32 0.0, %v597
  %v599 = vpop.f32.mrb[0].mxu0
  %v600 = vpop.f32.mrb[0].mxu0
  %v601 = vadd.f32 0.0, %v600
  %v602 = vpop.f32.mrb[0].mxu0
  %603 = vmatprep.mubr.bf16.mxu0 0
  %604 = vmatmul.mubr.bf16.gmra.mrb[0].mxu0 %v336
  %v605 = vpop.f32.mrb[0].mxu0
  %v606 = vadd.f32 0.0, %v605
  %v607 = vpop.f32.mrb[0].mxu0
  %v608 = vpop.f32.mrb[0].mxu0
  %v609 = vadd.f32 0.0, %v608
  %v610 = vpop.f32.mrb[0].mxu0
  %611 = vmatprep.mubr.bf16.mxu0 0
  %612 = vmatmul.mubr.bf16.gmra.mrb[0].mxu0 %v339
  %v613 = vpop.f32.mrb[0].mxu0
  %v614 = vadd.f32 0.0, %v613
  %v615 = vpop.f32.mrb[0].mxu0
  %v616 = vpop.f32.mrb[0].mxu0
  %v617 = vadd.f32 0.0, %v616
  %v618 = vpop.f32.mrb[0].mxu0
  %619 = vmatprep.mubr.bf16.mxu0 0
  %620 = vmatmul.mubr.bf16.gmra.mrb[0].mxu0 %v342
  %v621 = vpop.f32.mrb[0].mxu0
  %v622 = vadd.f32 0.0, %v621
  %v623 = vpop.f32.mrb[0].mxu0
  %v624 = vpop.f32.mrb[0].mxu0
  %v625 = vadd.f32 0.0, %v624
  %v626 = vpop.f32.mrb[0].mxu0
  %627 = vmatprep.mubr.bf16.mxu0 0
  %628 = vmatmul.mubr.bf16.gmra.mrb[0].mxu0 %v345
  %v629 = vpop.f32.mrb[0].mxu0
  %v630 = vadd.f32 0.0, %v629
  %v631 = vpop.f32.mrb[0].mxu0
  %v632 = vpop.f32.mrb[0].mxu0
  %v633 = vadd.f32 0.0, %v632
  %v634 = vpop.f32.mrb[0].mxu0
  %635 = vdwg.mxu0
  %v636 = vld [vmem:[%s2] sm:$0x1]
  %v638 = vlaneseq
  %v639 = vshrl.u32 %v638, 7
  %v640 = vsub.s32 0, %v639
  %v641 = vrot.slane %v636, %v640
  %v643 = vadd.f32 %v382, %v641
  %v644 = vadd.f32 %v385, %v641
  %v645 = vadd.f32 %v390, %v641
  %v646 = vadd.f32 %v393, %v641
  %v647 = vadd.f32 %v398, %v641
  %v648 = vadd.f32 %v401, %v641
  %v649 = vadd.f32 %v406, %v641
  %v650 = vadd.f32 %v409, %v641
  %v651 = vadd.f32 %v414, %v641
  %v652 = vadd.f32 %v417, %v641
  %v653 = vadd.f32 %v422, %v641
  %v654 = vadd.f32 %v425, %v641
  %v655 = vadd.f32 %v430, %v641
  %v656 = vadd.f32 %v433, %v641
  %v657 = vadd.f32 %v438, %v641
  %v658 = vadd.f32 %v441, %v641
  %v659 = vadd.f32 %v446, %v641
  %v660 = vadd.f32 %v449, %v641
  %v661 = vadd.f32 %v454, %v641
  %v662 = vadd.f32 %v457, %v641
  %v663 = vadd.f32 %v462, %v641
  %v664 = vadd.f32 %v465, %v641
  %v665 = vadd.f32 %v470, %v641
  %v666 = vadd.f32 %v473, %v641
  %v667 = vadd.f32 %v478, %v641
  %v668 = vadd.f32 %v481, %v641
  %v669 = vadd.f32 %v486, %v641
  %v670 = vadd.f32 %v489, %v641
  %v671 = vadd.f32 %v494, %v641
  %v672 = vadd.f32 %v497, %v641
  %v673 = vadd.f32 %v502, %v641
  %v674 = vadd.f32 %v505, %v641
  %v675 = vadd.f32 %v510, %v641
  %v676 = vadd.f32 %v513, %v641
  %v677 = vadd.f32 %v518, %v641
  %v678 = vadd.f32 %v521, %v641
  %v679 = vadd.f32 %v526, %v641
  %v680 = vadd.f32 %v529, %v641
  %v681 = vadd.f32 %v534, %v641
  %v682 = vadd.f32 %v537, %v641
  %v683 = vadd.f32 %v542, %v641
  %v684 = vadd.f32 %v545, %v641
  %v685 = vadd.f32 %v550, %v641
  %v686 = vadd.f32 %v553, %v641
  %v687 = vadd.f32 %v558, %v641
  %v688 = vadd.f32 %v561, %v641
  %v689 = vadd.f32 %v566, %v641
  %v690 = vadd.f32 %v569, %v641
  %v691 = vadd.f32 %v574, %v641
  %v692 = vadd.f32 %v577, %v641
  %v693 = vadd.f32 %v582, %v641
  %v694 = vadd.f32 %v585, %v641
  %v695 = vadd.f32 %v590, %v641
  %v696 = vadd.f32 %v593, %v641
  %v697 = vadd.f32 %v598, %v641
  %v698 = vadd.f32 %v601, %v641
  %v699 = vadd.f32 %v606, %v641
  %v700 = vadd.f32 %v609, %v641
  %v701 = vadd.f32 %v614, %v641
  %v702 = vadd.f32 %v617, %v641
  %v703 = vadd.f32 %v622, %v641
  %v704 = vadd.f32 %v625, %v641
  %v705 = vadd.f32 %v630, %v641
  %v706 = vadd.f32 %v633, %v641
  %v707 = vpack.c.bf16 %v644, %v643
  %v708 = vpack.c.bf16 %v646, %v645
  %v709 = vpack.c.bf16 %v648, %v647
  %v710 = vpack.c.bf16 %v650, %v649
  %v711 = vpack.c.bf16 %v652, %v651
  %v712 = vpack.c.bf16 %v654, %v653
  %v713 = vpack.c.bf16 %v656, %v655
  %v714 = vpack.c.bf16 %v658, %v657
  %v715 = vpack.c.bf16 %v660, %v659
  %v716 = vpack.c.bf16 %v662, %v661
  %v717 = vpack.c.bf16 %v664, %v663
  %v718 = vpack.c.bf16 %v666, %v665
  %v719 = vpack.c.bf16 %v668, %v667
  %v720 = vpack.c.bf16 %v670, %v669
  %v721 = vpack.c.bf16 %v672, %v671
  %v722 = vpack.c.bf16 %v674, %v673
  %v723 = vpack.c.bf16 %v676, %v675
  %v724 = vpack.c.bf16 %v678, %v677
  %v725 = vpack.c.bf16 %v680, %v679
  %v726 = vpack.c.bf16 %v682, %v681
  %v727 = vpack.c.bf16 %v684, %v683
  %v728 = vpack.c.bf16 %v686, %v685
  %v729 = vpack.c.bf16 %v688, %v687
  %v730 = vpack.c.bf16 %v690, %v689
  %v731 = vpack.c.bf16 %v692, %v691
  %v732 = vpack.c.bf16 %v694, %v693
  %v733 = vpack.c.bf16 %v696, %v695
  %v734 = vpack.c.bf16 %v698, %v697
  %v735 = vpack.c.bf16 %v700, %v699
  %v736 = vpack.c.bf16 %v702, %v701
  %v737 = vpack.c.bf16 %v704, %v703
  %v738 = vpack.c.bf16 %v706, %v705
  %v771 = vunpack.c.l.b16 %v707
  %v772 = vunpack.c.h.b16 %v707
  %v773 = vunpack.c.l.b16 %v708
  %v774 = vunpack.c.h.b16 %v708
  %v775 = vunpack.c.l.b16 %v709
  %v776 = vunpack.c.h.b16 %v709
  %v777 = vunpack.c.l.b16 %v710
  %v778 = vunpack.c.h.b16 %v710
  %v779 = vunpack.c.l.b16 %v711
  %v780 = vunpack.c.h.b16 %v711
  %v781 = vunpack.c.l.b16 %v712
  %v782 = vunpack.c.h.b16 %v712
  %v783 = vunpack.c.l.b16 %v713
  %v784 = vunpack.c.h.b16 %v713
  %v785 = vunpack.c.l.b16 %v714
  %v786 = vunpack.c.h.b16 %v714
  %v787 = vunpack.c.l.b16 %v715
  %v788 = vunpack.c.h.b16 %v715
  %v789 = vunpack.c.l.b16 %v716
  %v790 = vunpack.c.h.b16 %v716
  %v791 = vunpack.c.l.b16 %v717
  %v792 = vunpack.c.h.b16 %v717
  %v793 = vunpack.c.l.b16 %v718
  %v794 = vunpack.c.h.b16 %v718
  %v795 = vunpack.c.l.b16 %v719
  %v796 = vunpack.c.h.b16 %v719
  %v797 = vunpack.c.l.b16 %v720
  %v798 = vunpack.c.h.b16 %v720
  %v799 = vunpack.c.l.b16 %v721
  %v800 = vunpack.c.h.b16 %v721
  %v801 = vunpack.c.l.b16 %v722
  %v802 = vunpack.c.h.b16 %v722
  %v803 = vunpack.c.l.b16 %v723
  %v804 = vunpack.c.h.b16 %v723
  %v805 = vunpack.c.l.b16 %v724
  %v806 = vunpack.c.h.b16 %v724
  %v807 = vunpack.c.l.b16 %v725
  %v808 = vunpack.c.h.b16 %v725
  %v809 = vunpack.c.l.b16 %v726
  %v810 = vunpack.c.h.b16 %v726
  %v811 = vunpack.c.l.b16 %v727
  %v812 = vunpack.c.h.b16 %v727
  %v813 = vunpack.c.l.b16 %v728
  %v814 = vunpack.c.h.b16 %v728
  %v815 = vunpack.c.l.b16 %v729
  %v816 = vunpack.c.h.b16 %v729
  %v817 = vunpack.c.l.b16 %v730
  %v818 = vunpack.c.h.b16 %v730
  %v819 = vunpack.c.l.b16 %v731
  %v820 = vunpack.c.h.b16 %v731
  %v821 = vunpack.c.l.b16 %v732
  %v822 = vunpack.c.h.b16 %v732
  %v823 = vunpack.c.l.b16 %v733
  %v824 = vunpack.c.h.b16 %v733
  %v825 = vunpack.c.l.b16 %v734
  %v826 = vunpack.c.h.b16 %v734
  %v827 = vunpack.c.l.b16 %v735
  %v828 = vunpack.c.h.b16 %v735
  %v829 = vunpack.c.l.b16 %v736
  %v830 = vunpack.c.h.b16 %v736
  %v831 = vunpack.c.l.b16 %v737
  %v832 = vunpack.c.h.b16 %v737
  %v833 = vunpack.c.l.b16 %v738
  %v834 = vunpack.c.h.b16 %v738
  %v835 = vpack.c.b16 %v771, %v771
  %v836 = vpack.c.b16 %v772, %v772
  %v837 = vpack.c.b16 %v773, %v773
  %v838 = vpack.c.b16 %v774, %v774
  %v839 = vpack.c.b16 %v775, %v775
  %v840 = vpack.c.b16 %v776, %v776
  %v841 = vpack.c.b16 %v777, %v777
  %v842 = vpack.c.b16 %v778, %v778
  %v843 = vpack.c.b16 %v779, %v779
  %v844 = vpack.c.b16 %v780, %v780
  %v845 = vpack.c.b16 %v781, %v781
  %v846 = vpack.c.b16 %v782, %v782
  %v847 = vpack.c.b16 %v783, %v783
  %v848 = vpack.c.b16 %v784, %v784
  %v849 = vpack.c.b16 %v785, %v785
  %v850 = vpack.c.b16 %v786, %v786
  %v851 = vpack.c.b16 %v787, %v787
  %v852 = vpack.c.b16 %v788, %v788
  %v853 = vpack.c.b16 %v789, %v789
  %v854 = vpack.c.b16 %v790, %v790
  %v855 = vpack.c.b16 %v791, %v791
  %v856 = vpack.c.b16 %v792, %v792
  %v857 = vpack.c.b16 %v793, %v793
  %v858 = vpack.c.b16 %v794, %v794
  %v859 = vpack.c.b16 %v795, %v795
  %v860 = vpack.c.b16 %v796, %v796
  %v861 = vpack.c.b16 %v797, %v797
  %v862 = vpack.c.b16 %v798, %v798
  %v863 = vpack.c.b16 %v799, %v799
  %v864 = vpack.c.b16 %v800, %v800
  %v865 = vpack.c.b16 %v801, %v801
  %v866 = vpack.c.b16 %v802, %v802
  %v867 = vpack.c.b16 %v803, %v803
  %v868 = vpack.c.b16 %v804, %v804
  %v869 = vpack.c.b16 %v805, %v805
  %v870 = vpack.c.b16 %v806, %v806
  %v871 = vpack.c.b16 %v807, %v807
  %v872 = vpack.c.b16 %v808, %v808
  %v873 = vpack.c.b16 %v809, %v809
  %v874 = vpack.c.b16 %v810, %v810
  %v875 = vpack.c.b16 %v811, %v811
  %v876 = vpack.c.b16 %v812, %v812
  %v877 = vpack.c.b16 %v813, %v813
  %v878 = vpack.c.b16 %v814, %v814
  %v879 = vpack.c.b16 %v815, %v815
  %v880 = vpack.c.b16 %v816, %v816
  %v881 = vpack.c.b16 %v817, %v817
  %v882 = vpack.c.b16 %v818, %v818
  %v883 = vpack.c.b16 %v819, %v819
  %v884 = vpack.c.b16 %v820, %v820
  %v885 = vpack.c.b16 %v821, %v821
  %v886 = vpack.c.b16 %v822, %v822
  %v887 = vpack.c.b16 %v823, %v823
  %v888 = vpack.c.b16 %v824, %v824
  %v889 = vpack.c.b16 %v825, %v825
  %v890 = vpack.c.b16 %v826, %v826
  %v891 = vpack.c.b16 %v827, %v827
  %v892 = vpack.c.b16 %v828, %v828
  %v893 = vpack.c.b16 %v829, %v829
  %v894 = vpack.c.b16 %v830, %v830
  %v895 = vpack.c.b16 %v831, %v831
  %v896 = vpack.c.b16 %v832, %v832
  %v897 = vpack.c.b16 %v833, %v833
  %v898 = vpack.c.b16 %v834, %v834
  %vm963 = vcmask 60416
  %964 = vst.msk [vmem:[%s3] sm:$0xf] %vm963, %v835
  %965 = vst.msk [vmem:[%s3 + $0x4] sm:$0xf] %vm963, %v836
  %966 = vst.msk [vmem:[%s3 + $0x8] sm:$0xf] %vm963, %v837
  %967 = vst.msk [vmem:[%s3 + $0xc] sm:$0xf] %vm963, %v838
  %968 = vst.msk [vmem:[%s3 + $0x10] sm:$0xf] %vm963, %v839
  %969 = vst.msk [vmem:[%s3 + $0x14] sm:$0xf] %vm963, %v840
  %970 = vst.msk [vmem:[%s3 + $0x18] sm:$0xf] %vm963, %v841
  %971 = vst.msk [vmem:[%s3 + $0x1c] sm:$0xf] %vm963, %v842
  %972 = vst.msk [vmem:[%s3 + $0x20] sm:$0xf] %vm963, %v843
  %973 = vst.msk [vmem:[%s3 + $0x24] sm:$0xf] %vm963, %v844
  %974 = vst.msk [vmem:[%s3 + $0x28] sm:$0xf] %vm963, %v845
  %975 = vst.msk [vmem:[%s3 + $0x2c] sm:$0xf] %vm963, %v846
  %976 = vst.msk [vmem:[%s3 + $0x30] sm:$0xf] %vm963, %v847
  %977 = vst.msk [vmem:[%s3 + $0x34] sm:$0xf] %vm963, %v848
  %978 = vst.msk [vmem:[%s3 + $0x38] sm:$0xf] %vm963, %v849
  %979 = vst.msk [vmem:[%s3 + $0x3c] sm:$0xf] %vm963, %v850
  %980 = vst.msk [vmem:[%s3 + $0x40] sm:$0xf] %vm963, %v851
  %981 = vst.msk [vmem:[%s3 + $0x44] sm:$0xf] %vm963, %v852
  %982 = vst.msk [vmem:[%s3 + $0x48] sm:$0xf] %vm963, %v853
  %983 = vst.msk [vmem:[%s3 + $0x4c] sm:$0xf] %vm963, %v854
  %984 = vst.msk [vmem:[%s3 + $0x50] sm:$0xf] %vm963, %v855
  %985 = vst.msk [vmem:[%s3 + $0x54] sm:$0xf] %vm963, %v856
  %986 = vst.msk [vmem:[%s3 + $0x58] sm:$0xf] %vm963, %v857
  %987 = vst.msk [vmem:[%s3 + $0x5c] sm:$0xf] %vm963, %v858
  %988 = vst.msk [vmem:[%s3 + $0x60] sm:$0xf] %vm963, %v859
  %989 = vst.msk [vmem:[%s3 + $0x64] sm:$0xf] %vm963, %v860
  %990 = vst.msk [vmem:[%s3 + $0x68] sm:$0xf] %vm963, %v861
  %991 = vst.msk [vmem:[%s3 + $0x6c] sm:$0xf] %vm963, %v862
  %992 = vst.msk [vmem:[%s3 + $0x70] sm:$0xf] %vm963, %v863
  %993 = vst.msk [vmem:[%s3 + $0x74] sm:$0xf] %vm963, %v864
  %994 = vst.msk [vmem:[%s3 + $0x78] sm:$0xf] %vm963, %v865
  %995 = vst.msk [vmem:[%s3 + $0x7c] sm:$0xf] %vm963, %v866
  %996 = vst.msk [vmem:[%s3 + $0x80] sm:$0xf] %vm963, %v867
  %997 = vst.msk [vmem:[%s3 + $0x84] sm:$0xf] %vm963, %v868
  %998 = vst.msk [vmem:[%s3 + $0x88] sm:$0xf] %vm963, %v869
  %999 = vst.msk [vmem:[%s3 + $0x8c] sm:$0xf] %vm963, %v870
  %1000 = vst.msk [vmem:[%s3 + $0x90] sm:$0xf] %vm963, %v871
  %1001 = vst.msk [vmem:[%s3 + $0x94] sm:$0xf] %vm963, %v872
  %1002 = vst.msk [vmem:[%s3 + $0x98] sm:$0xf] %vm963, %v873
  %1003 = vst.msk [vmem:[%s3 + $0x9c] sm:$0xf] %vm963, %v874
  %1004 = vst.msk [vmem:[%s3 + $0xa0] sm:$0xf] %vm963, %v875
  %1005 = vst.msk [vmem:[%s3 + $0xa4] sm:$0xf] %vm963, %v876
  %1006 = vst.msk [vmem:[%s3 + $0xa8] sm:$0xf] %vm963, %v877
  %1007 = vst.msk [vmem:[%s3 + $0xac] sm:$0xf] %vm963, %v878
  %1008 = vst.msk [vmem:[%s3 + $0xb0] sm:$0xf] %vm963, %v879
  %1009 = vst.msk [vmem:[%s3 + $0xb4] sm:$0xf] %vm963, %v880
  %1010 = vst.msk [vmem:[%s3 + $0xb8] sm:$0xf] %vm963, %v881
  %1011 = vst.msk [vmem:[%s3 + $0xbc] sm:$0xf] %vm963, %v882
  %1012 = vst.msk [vmem:[%s3 + $0xc0] sm:$0xf] %vm963, %v883
  %1013 = vst.msk [vmem:[%s3 + $0xc4] sm:$0xf] %vm963, %v884
  %1014 = vst.msk [vmem:[%s3 + $0xc8] sm:$0xf] %vm963, %v885
  %1015 = vst.msk [vmem:[%s3 + $0xcc] sm:$0xf] %vm963, %v886
  %1016 = vst.msk [vmem:[%s3 + $0xd0] sm:$0xf] %vm963, %v887
  %1017 = vst.msk [vmem:[%s3 + $0xd4] sm:$0xf] %vm963, %v888
  %1018 = vst.msk [vmem:[%s3 + $0xd8] sm:$0xf] %vm963, %v889
  %1019 = vst.msk [vmem:[%s3 + $0xdc] sm:$0xf] %vm963, %v890
  %1020 = vst.msk [vmem:[%s3 + $0xe0] sm:$0xf] %vm963, %v891
  %1021 = vst.msk [vmem:[%s3 + $0xe4] sm:$0xf] %vm963, %v892
  %1022 = vst.msk [vmem:[%s3 + $0xe8] sm:$0xf] %vm963, %v893
  %1023 = vst.msk [vmem:[%s3 + $0xec] sm:$0xf] %vm963, %v894
  %1024 = vst.msk [vmem:[%s3 + $0xf0] sm:$0xf] %vm963, %v895
  %1025 = vst.msk [vmem:[%s3 + $0xf4] sm:$0xf] %vm963, %v896
  %1026 = vst.msk [vmem:[%s3 + $0xf8] sm:$0xf] %vm963, %v897
  %1027 = vst.msk [vmem:[%s3 + $0xfc] sm:$0xf] %vm963, %v898
  %vm1028 = vcmask 64512
  %v1029 = vsel %vm1028, %v382, 0.0
  %v1030 = vsel %vm1028, %v385, 0.0
  %v1031 = vadd.f32 %v1029, %v1030
  %v1032 = vsel %vm1028, %v390, 0.0
  %v1033 = vadd.f32 %v1031, %v1032
  %v1034 = vsel %vm1028, %v393, 0.0
  %v1035 = vadd.f32 %v1033, %v1034
  %v1036 = vsel %vm1028, %v398, 0.0
  %v1037 = vadd.f32 %v1035, %v1036
  %v1038 = vsel %vm1028, %v401, 0.0
  %v1039 = vadd.f32 %v1037, %v1038
  %v1040 = vsel %vm1028, %v406, 0.0
  %v1041 = vadd.f32 %v1039, %v1040
  %v1042 = vsel %vm1028, %v409, 0.0
  %v1043 = vadd.f32 %v1041, %v1042
  %v1044 = vsel %vm1028, %v414, 0.0
  %v1045 = vadd.f32 %v1043, %v1044
  %v1046 = vsel %vm1028, %v417, 0.0
  %v1047 = vadd.f32 %v1045, %v1046
  %v1048 = vsel %vm1028, %v422, 0.0
  %v1049 = vadd.f32 %v1047, %v1048
  %v1050 = vsel %vm1028, %v425, 0.0
  %v1051 = vadd.f32 %v1049, %v1050
  %v1052 = vsel %vm1028, %v430, 0.0
  %v1053 = vadd.f32 %v1051, %v1052
  %v1054 = vsel %vm1028, %v433, 0.0
  %v1055 = vadd.f32 %v1053, %v1054
  %v1056 = vsel %vm1028, %v438, 0.0
  %v1057 = vadd.f32 %v1055, %v1056
  %v1058 = vsel %vm1028, %v441, 0.0
  %v1059 = vadd.f32 %v1057, %v1058
  %v1060 = vsel %vm1028, %v446, 0.0
  %v1061 = vadd.f32 %v1059, %v1060
  %v1062 = vsel %vm1028, %v449, 0.0
  %v1063 = vadd.f32 %v1061, %v1062
  %v1064 = vsel %vm1028, %v454, 0.0
  %v1065 = vadd.f32 %v1063, %v1064
  %v1066 = vsel %vm1028, %v457, 0.0
  %v1067 = vadd.f32 %v1065, %v1066
  %v1068 = vsel %vm1028, %v462, 0.0
  %v1069 = vadd.f32 %v1067, %v1068
  %v1070 = vsel %vm1028, %v465, 0.0
  %v1071 = vadd.f32 %v1069, %v1070
  %v1072 = vsel %vm1028, %v470, 0.0
  %v1073 = vadd.f32 %v1071, %v1072
  %v1074 = vsel %vm1028, %v473, 0.0
  %v1075 = vadd.f32 %v1073, %v1074
  %v1076 = vsel %vm1028, %v478, 0.0
  %v1077 = vadd.f32 %v1075, %v1076
  %v1078 = vsel %vm1028, %v481, 0.0
  %v1079 = vadd.f32 %v1077, %v1078
  %v1080 = vsel %vm1028, %v486, 0.0
  %v1081 = vadd.f32 %v1079, %v1080
  %v1082 = vsel %vm1028, %v489, 0.0
  %v1083 = vadd.f32 %v1081, %v1082
  %v1084 = vsel %vm1028, %v494, 0.0
  %v1085 = vadd.f32 %v1083, %v1084
  %v1086 = vsel %vm1028, %v497, 0.0
  %v1087 = vadd.f32 %v1085, %v1086
  %v1088 = vsel %vm1028, %v502, 0.0
  %v1089 = vadd.f32 %v1087, %v1088
  %v1090 = vsel %vm1028, %v505, 0.0
  %v1091 = vadd.f32 %v1089, %v1090
  %v1092 = vsel %vm1028, %v510, 0.0
  %v1093 = vadd.f32 %v1091, %v1092
  %v1094 = vsel %vm1028, %v513, 0.0
  %v1095 = vadd.f32 %v1093, %v1094
  %v1096 = vsel %vm1028, %v518, 0.0
  %v1097 = vadd.f32 %v1095, %v1096
  %v1098 = vsel %vm1028, %v521, 0.0
  %v1099 = vadd.f32 %v1097, %v1098
  %v1100 = vsel %vm1028, %v526, 0.0
  %v1101 = vadd.f32 %v1099, %v1100
  %v1102 = vsel %vm1028, %v529, 0.0
  %v1103 = vadd.f32 %v1101, %v1102
  %v1104 = vsel %vm1028, %v534, 0.0
  %v1105 = vadd.f32 %v1103, %v1104
  %v1106 = vsel %vm1028, %v537, 0.0
  %v1107 = vadd.f32 %v1105, %v1106
  %v1108 = vsel %vm1028, %v542, 0.0
  %v1109 = vadd.f32 %v1107, %v1108
  %v1110 = vsel %vm1028, %v545, 0.0
  %v1111 = vadd.f32 %v1109, %v1110
  %v1112 = vsel %vm1028, %v550, 0.0
  %v1113 = vadd.f32 %v1111, %v1112
  %v1114 = vsel %vm1028, %v553, 0.0
  %v1115 = vadd.f32 %v1113, %v1114
  %v1116 = vsel %vm1028, %v558, 0.0
  %v1117 = vadd.f32 %v1115, %v1116
  %v1118 = vsel %vm1028, %v561, 0.0
  %v1119 = vadd.f32 %v1117, %v1118
  %v1120 = vsel %vm1028, %v566, 0.0
  %v1121 = vadd.f32 %v1119, %v1120
  %v1122 = vsel %vm1028, %v569, 0.0
  %v1123 = vadd.f32 %v1121, %v1122
  %v1124 = vsel %vm1028, %v574, 0.0
  %v1125 = vadd.f32 %v1123, %v1124
  %v1126 = vsel %vm1028, %v577, 0.0
  %v1127 = vadd.f32 %v1125, %v1126
  %v1128 = vsel %vm1028, %v582, 0.0
  %v1129 = vadd.f32 %v1127, %v1128
  %v1130 = vsel %vm1028, %v585, 0.0
  %v1131 = vadd.f32 %v1129, %v1130
  %v1132 = vsel %vm1028, %v590, 0.0
  %v1133 = vadd.f32 %v1131, %v1132
  %v1134 = vsel %vm1028, %v593, 0.0
  %v1135 = vadd.f32 %v1133, %v1134
  %v1136 = vsel %vm1028, %v598, 0.0
  %v1137 = vadd.f32 %v1135, %v1136
  %v1138 = vsel %vm1028, %v601, 0.0
  %v1139 = vadd.f32 %v1137, %v1138
  %v1140 = vsel %vm1028, %v606, 0.0
  %v1141 = vadd.f32 %v1139, %v1140
  %v1142 = vsel %vm1028, %v609, 0.0
  %v1143 = vadd.f32 %v1141, %v1142
  %v1144 = vsel %vm1028, %v614, 0.0
  %v1145 = vadd.f32 %v1143, %v1144
  %v1146 = vsel %vm1028, %v617, 0.0
  %v1147 = vadd.f32 %v1145, %v1146
  %v1148 = vsel %vm1028, %v622, 0.0
  %v1149 = vadd.f32 %v1147, %v1148
  %v1150 = vsel %vm1028, %v625, 0.0
  %v1151 = vadd.f32 %v1149, %v1150
  %v1152 = vsel %vm1028, %v630, 0.0
  %v1153 = vadd.f32 %v1151, %v1152
  %v1154 = vsel %vm1028, %v633, 0.0
  %v1155 = vadd.f32 %v1153, %v1154
  %v1156 = vrot.slane %v1155, 4
  %v1157 = vadd.f32 %v1155, %v1156
  %v1158 = vrot.slane %v1157, 2
  %v1159 = vadd.f32 %v1157, %v1158
  %v1160 = vrot.slane %v1159, 1
  %v1161 = vadd.f32 %v1159, %v1160
  %v1162 = vmul.f32 %v382, %v382
  %v1163 = vmul.f32 %v385, %v385
  %v1164 = vmul.f32 %v390, %v390
  %v1165 = vmul.f32 %v393, %v393
  %v1166 = vmul.f32 %v398, %v398
  %v1167 = vmul.f32 %v401, %v401
  %v1168 = vmul.f32 %v406, %v406
  %v1169 = vmul.f32 %v409, %v409
  %v1170 = vmul.f32 %v414, %v414
  %v1171 = vmul.f32 %v417, %v417
  %v1172 = vmul.f32 %v422, %v422
  %v1173 = vmul.f32 %v425, %v425
  %v1174 = vmul.f32 %v430, %v430
  %v1175 = vmul.f32 %v433, %v433
  %v1176 = vmul.f32 %v438, %v438
  %v1177 = vmul.f32 %v441, %v441
  %v1178 = vmul.f32 %v446, %v446
  %v1179 = vmul.f32 %v449, %v449
  %v1180 = vmul.f32 %v454, %v454
  %v1181 = vmul.f32 %v457, %v457
  %v1182 = vmul.f32 %v462, %v462
  %v1183 = vmul.f32 %v465, %v465
  %v1184 = vmul.f32 %v470, %v470
  %v1185 = vmul.f32 %v473, %v473
  %v1186 = vmul.f32 %v478, %v478
  %v1187 = vmul.f32 %v481, %v481
  %v1188 = vmul.f32 %v486, %v486
  %v1189 = vmul.f32 %v489, %v489
  %v1190 = vmul.f32 %v494, %v494
  %v1191 = vmul.f32 %v497, %v497
  %v1192 = vmul.f32 %v502, %v502
  %v1193 = vmul.f32 %v505, %v505
  %v1194 = vmul.f32 %v510, %v510
  %v1195 = vmul.f32 %v513, %v513
  %v1196 = vmul.f32 %v518, %v518
  %v1197 = vmul.f32 %v521, %v521
  %v1198 = vmul.f32 %v526, %v526
  %v1199 = vmul.f32 %v529, %v529
  %v1200 = vmul.f32 %v534, %v534
  %v1201 = vmul.f32 %v537, %v537
  %v1202 = vmul.f32 %v542, %v542
  %v1203 = vmul.f32 %v545, %v545
  %v1204 = vmul.f32 %v550, %v550
  %v1205 = vmul.f32 %v553, %v553
  %v1206 = vmul.f32 %v558, %v558
  %v1207 = vmul.f32 %v561, %v561
  %v1208 = vmul.f32 %v566, %v566
  %v1209 = vmul.f32 %v569, %v569
  %v1210 = vmul.f32 %v574, %v574
  %v1211 = vmul.f32 %v577, %v577
  %v1212 = vmul.f32 %v582, %v582
  %v1213 = vmul.f32 %v585, %v585
  %v1214 = vmul.f32 %v590, %v590
  %v1215 = vmul.f32 %v593, %v593
  %v1216 = vmul.f32 %v598, %v598
  %v1217 = vmul.f32 %v601, %v601
  %v1218 = vmul.f32 %v606, %v606
  %v1219 = vmul.f32 %v609, %v609
  %v1220 = vmul.f32 %v614, %v614
  %v1221 = vmul.f32 %v617, %v617
  %v1222 = vmul.f32 %v622, %v622
  %v1223 = vmul.f32 %v625, %v625
  %v1224 = vmul.f32 %v630, %v630
  %v1225 = vmul.f32 %v633, %v633
  %v1226 = vsel %vm1028, %v1162, 0.0
  %v1227 = vsel %vm1028, %v1163, 0.0
  %v1228 = vadd.f32 %v1226, %v1227
  %v1229 = vsel %vm1028, %v1164, 0.0
  %v1230 = vadd.f32 %v1228, %v1229
  %v1231 = vsel %vm1028, %v1165, 0.0
  %v1232 = vadd.f32 %v1230, %v1231
  %v1233 = vsel %vm1028, %v1166, 0.0
  %v1234 = vadd.f32 %v1232, %v1233
  %v1235 = vsel %vm1028, %v1167, 0.0
  %v1236 = vadd.f32 %v1234, %v1235
  %v1237 = vsel %vm1028, %v1168, 0.0
  %v1238 = vadd.f32 %v1236, %v1237
  %v1239 = vsel %vm1028, %v1169, 0.0
  %v1240 = vadd.f32 %v1238, %v1239
  %v1241 = vsel %vm1028, %v1170, 0.0
  %v1242 = vadd.f32 %v1240, %v1241
  %v1243 = vsel %vm1028, %v1171, 0.0
  %v1244 = vadd.f32 %v1242, %v1243
  %v1245 = vsel %vm1028, %v1172, 0.0
  %v1246 = vadd.f32 %v1244, %v1245
  %v1247 = vsel %vm1028, %v1173, 0.0
  %v1248 = vadd.f32 %v1246, %v1247
  %v1249 = vsel %vm1028, %v1174, 0.0
  %v1250 = vadd.f32 %v1248, %v1249
  %v1251 = vsel %vm1028, %v1175, 0.0
  %v1252 = vadd.f32 %v1250, %v1251
  %v1253 = vsel %vm1028, %v1176, 0.0
  %v1254 = vadd.f32 %v1252, %v1253
  %v1255 = vsel %vm1028, %v1177, 0.0
  %v1256 = vadd.f32 %v1254, %v1255
  %v1257 = vsel %vm1028, %v1178, 0.0
  %v1258 = vadd.f32 %v1256, %v1257
  %v1259 = vsel %vm1028, %v1179, 0.0
  %v1260 = vadd.f32 %v1258, %v1259
  %v1261 = vsel %vm1028, %v1180, 0.0
  %v1262 = vadd.f32 %v1260, %v1261
  %v1263 = vsel %vm1028, %v1181, 0.0
  %v1264 = vadd.f32 %v1262, %v1263
  %v1265 = vsel %vm1028, %v1182, 0.0
  %v1266 = vadd.f32 %v1264, %v1265
  %v1267 = vsel %vm1028, %v1183, 0.0
  %v1268 = vadd.f32 %v1266, %v1267
  %v1269 = vsel %vm1028, %v1184, 0.0
  %v1270 = vadd.f32 %v1268, %v1269
  %v1271 = vsel %vm1028, %v1185, 0.0
  %v1272 = vadd.f32 %v1270, %v1271
  %v1273 = vsel %vm1028, %v1186, 0.0
  %v1274 = vadd.f32 %v1272, %v1273
  %v1275 = vsel %vm1028, %v1187, 0.0
  %v1276 = vadd.f32 %v1274, %v1275
  %v1277 = vsel %vm1028, %v1188, 0.0
  %v1278 = vadd.f32 %v1276, %v1277
  %v1279 = vsel %vm1028, %v1189, 0.0
  %v1280 = vadd.f32 %v1278, %v1279
  %v1281 = vsel %vm1028, %v1190, 0.0
  %v1282 = vadd.f32 %v1280, %v1281
  %v1283 = vsel %vm1028, %v1191, 0.0
  %v1284 = vadd.f32 %v1282, %v1283
  %v1285 = vsel %vm1028, %v1192, 0.0
  %v1286 = vadd.f32 %v1284, %v1285
  %v1287 = vsel %vm1028, %v1193, 0.0
  %v1288 = vadd.f32 %v1286, %v1287
  %v1289 = vsel %vm1028, %v1194, 0.0
  %v1290 = vadd.f32 %v1288, %v1289
  %v1291 = vsel %vm1028, %v1195, 0.0
  %v1292 = vadd.f32 %v1290, %v1291
  %v1293 = vsel %vm1028, %v1196, 0.0
  %v1294 = vadd.f32 %v1292, %v1293
  %v1295 = vsel %vm1028, %v1197, 0.0
  %v1296 = vadd.f32 %v1294, %v1295
  %v1297 = vsel %vm1028, %v1198, 0.0
  %v1298 = vadd.f32 %v1296, %v1297
  %v1299 = vsel %vm1028, %v1199, 0.0
  %v1300 = vadd.f32 %v1298, %v1299
  %v1301 = vsel %vm1028, %v1200, 0.0
  %v1302 = vadd.f32 %v1300, %v1301
  %v1303 = vsel %vm1028, %v1201, 0.0
  %v1304 = vadd.f32 %v1302, %v1303
  %v1305 = vsel %vm1028, %v1202, 0.0
  %v1306 = vadd.f32 %v1304, %v1305
  %v1307 = vsel %vm1028, %v1203, 0.0
  %v1308 = vadd.f32 %v1306, %v1307
  %v1309 = vsel %vm1028, %v1204, 0.0
  %v1310 = vadd.f32 %v1308, %v1309
  %v1311 = vsel %vm1028, %v1205, 0.0
  %v1312 = vadd.f32 %v1310, %v1311
  %v1313 = vsel %vm1028, %v1206, 0.0
  %v1314 = vadd.f32 %v1312, %v1313
  %v1315 = vsel %vm1028, %v1207, 0.0
  %v1316 = vadd.f32 %v1314, %v1315
  %v1317 = vsel %vm1028, %v1208, 0.0
  %v1318 = vadd.f32 %v1316, %v1317
  %v1319 = vsel %vm1028, %v1209, 0.0
  %v1320 = vadd.f32 %v1318, %v1319
  %v1321 = vsel %vm1028, %v1210, 0.0
  %v1322 = vadd.f32 %v1320, %v1321
  %v1323 = vsel %vm1028, %v1211, 0.0
  %v1324 = vadd.f32 %v1322, %v1323
  %v1325 = vsel %vm1028, %v1212, 0.0
  %v1326 = vadd.f32 %v1324, %v1325
  %v1327 = vsel %vm1028, %v1213, 0.0
  %v1328 = vadd.f32 %v1326, %v1327
  %v1329 = vsel %vm1028, %v1214, 0.0
  %v1330 = vadd.f32 %v1328, %v1329
  %v1331 = vsel %vm1028, %v1215, 0.0
  %v1332 = vadd.f32 %v1330, %v1331
  %v1333 = vsel %vm1028, %v1216, 0.0
  %v1334 = vadd.f32 %v1332, %v1333
  %v1335 = vsel %vm1028, %v1217, 0.0
  %v1336 = vadd.f32 %v1334, %v1335
  %v1337 = vsel %vm1028, %v1218, 0.0
  %v1338 = vadd.f32 %v1336, %v1337
  %v1339 = vsel %vm1028, %v1219, 0.0
  %v1340 = vadd.f32 %v1338, %v1339
  %v1341 = vsel %vm1028, %v1220, 0.0
  %v1342 = vadd.f32 %v1340, %v1341
  %v1343 = vsel %vm1028, %v1221, 0.0
  %v1344 = vadd.f32 %v1342, %v1343
  %v1345 = vsel %vm1028, %v1222, 0.0
  %v1346 = vadd.f32 %v1344, %v1345
  %v1347 = vsel %vm1028, %v1223, 0.0
  %v1348 = vadd.f32 %v1346, %v1347
  %v1349 = vsel %vm1028, %v1224, 0.0
  %v1350 = vadd.f32 %v1348, %v1349
  %v1351 = vsel %vm1028, %v1225, 0.0
  %v1352 = vadd.f32 %v1350, %v1351
  %v1353 = vrot.slane %v1352, 4
  %v1354 = vadd.f32 %v1352, %v1353
  %v1355 = vrot.slane %v1354, 2
  %v1356 = vadd.f32 %v1354, %v1355
  %v1357 = vrot.slane %v1356, 1
  %v1358 = vadd.f32 %v1356, %v1357
  %1359 = vst.msk [vmem:[%s4] sm:$0xff] %vm1028, %v1161
  %1360 = vst.msk [vmem:[%s5] sm:$0xff] %vm1028, %v1358
  // Predicated region
  $region14: #{conv_bn_lrelu.2} parent=0 // pred_check
    _
  $region15: #{conv_bn_lrelu.2} parent=0 // pred_check_branch
    %1362 = sbr.rel (0) target = $region17
  $region16: #{conv_bn_lrelu.2} parent=0 // pred_region
    _
  $region17: #{conv_bn_lrelu.2} parent=0 // pred_fallthru
    _
  // Predicated region
  $region18: #{conv_bn_lrelu.2} parent=0 // pred_check
    _
  $region19: #{conv_bn_lrelu.2} parent=0 // pred_check_branch
    %1364 = sbr.rel (0) target = $region21
  $region20: #{conv_bn_lrelu.2} parent=0 // pred_region
    _
  $region21: #{conv_bn_lrelu.2} parent=0 // pred_fallthru
    _
  // Predicated region
  $region22: #{conv_bn_lrelu.2} parent=0 // pred_check
    _
  $region23: #{conv_bn_lrelu.2} parent=0 // pred_check_branch
    %1366 = sbr.rel (0) target = $region25
  $region24: #{conv_bn_lrelu.2} parent=0 // pred_region
    _
  $region25: #{conv_bn_lrelu.2} parent=0 // pred_fallthru
    _
  // Predicated region
  $region26: #{conv_bn_lrelu.2} parent=0 // pred_check
    _
  $region27: #{conv_bn_lrelu.2} parent=0 // pred_check_branch
    %1368 = sbr.rel (0) target = $region29
  $region28: #{conv_bn_lrelu.2} parent=0 // pred_region
    _
  $region29: #{conv_bn_lrelu.2} parent=0 // pred_fallthru
    _
  // Predicated region
  $region30: #{conv_bn_lrelu.2} parent=0 // pred_check
    _
  $region31: #{conv_bn_lrelu.2} parent=0 // pred_check_branch
    %1370 = sbr.rel (0) target = $region33
  $region32: #{conv_bn_lrelu.2} parent=0 // pred_region
    _
  $region33: #{conv_bn_lrelu.2} parent=0 // pred_fallthru
    _
  // Predicated region
  $region34: #{conv_bn_lrelu.2} parent=0 // pred_check
    _
  $region35: #{conv_bn_lrelu.2} parent=0 // pred_check_branch
    %1372 = sbr.rel (0) target = $region37
  $region36: #{conv_bn_lrelu.2} parent=0 // pred_region
    _
  $region37: #{conv_bn_lrelu.2} parent=0 // pred_fallthru
    _

</llo_original>
